<compile_context>
chip_gen: v6e
topology: v6e:2x2x1
jax: 0.10.0
libtpu: 0.0.40
codegen_flags: <defaults>
</compile_context>

<pallas_src>
import numpy as np
import jax
import jax.numpy as jnp
from jax import lax
from jax.experimental import pallas as pl
from jax.experimental.pallas import tpu as pltpu


def _round_up(x, m):
    return (x + m - 1) // m * m


# ----------------------------------------------------------------------------
# Fused kernel: all LSTM layers (wavefronted) + regressor MLP in one invocation.
# All weights and activations stay in VMEM for the whole call.
# ----------------------------------------------------------------------------
def _make_fused_kernel(n_layers):
    def kernel(*refs):
        idx = 0
        x_ref = refs[idx]; idx += 1            # (T, BT, D) time-major input tile
        wih0 = refs[idx]; idx += 1             # (D, 4H)   layer-0 input weight (transposed)
        b0 = refs[idx]; idx += 1               # (1, 4H)   layer-0 fused bias (b_ih + b_hh)
        wblk_ref = refs[idx]; idx += 1         # (L*H, L*4H) stacked wavefront weight
        if n_layers > 1:
            brest_ref = refs[idx]; idx += 1    # (1, (L-1)*4H) fused biases of layers >= 1
        rw1, rb1, rw2, rb2, rw3t, rb3 = refs[idx:idx + 6]
        out_ref = refs[-1]                     # (BT, Wp) packed output slab

        T, BT, D = x_ref.shape
        H = rw1.shape[0]
        G = 4 * H

        # ---- Layer-0 input projection hoisted out of the recurrence: ONE MXU matmul
        # over all T*BT rows.  Time-major layout => row index t*BT + b, so each step's
        # slice below is 8 contiguous sublanes (no strided gather).
        x_flat = x_ref[...].reshape(T * BT, D)
        gx0 = jnp.dot(x_flat, wih0[...], preferred_element_type=jnp.float32) + b0[...]

        wblk = wblk_ref[...]                   # load recurrent block weight once
        if n_layers > 1:
            brest = brest_ref[...]

        h = [jnp.zeros((BT, H), jnp.float32) for _ in range(n_layers)]
        c = [jnp.zeros((BT, H), jnp.float32) for _ in range(n_layers)]

        # ---- Wavefront over (time, layer).  At wavefront step s, layer l computes its
        # time step s - l; one fused (BT, L*H) x (L*H, L*4H) matmul produces every active
        # layer's recurrent + input-projection contribution at once.  Gate order per
        # layer block follows PyTorch: [i, f, g, o].
        for s in range(T + n_layers - 1):      # static unroll — T, L small & static
            hcat = h[0] if n_layers == 1 else jnp.concatenate(h, axis=-1)
            comb = jnp.dot(hcat, wblk, preferred_element_type=jnp.float32)
            lo = max(0, s - (T - 1))
            hi = min(n_layers - 1, s)
            for l in range(lo, hi + 1):        # only ACTIVE layers update state
                if l == 0:
                    gates = comb[:, 0:G] + gx0[s * BT:(s + 1) * BT, :]
                else:
                    gates = comb[:, l * G:(l + 1) * G] + brest[:, (l - 1) * G:l * G]
                # One full-width sigmoid push; tanh only on the g lane-group.
                sig = jax.nn.sigmoid(gates)
                g_g = jnp.tanh(gates[:, 2 * H:3 * H])
                c[l] = sig[:, H:2 * H] * c[l] + sig[:, 0:H] * g_g
                h[l] = sig[:, 3 * H:4 * H] * jnp.tanh(c[l])

        feat = h[n_layers - 1]                 # == encoder_outputs[:, -1, :]

        # ---- Regressor MLP.  TODO(synk): Dropout layers are identity (inference mode).
        a1 = jnp.maximum(
            jnp.dot(feat, rw1[...], preferred_element_type=jnp.float32) + rb1[...], 0.0)
        a2 = jnp.maximum(
            jnp.dot(a1, rw2[...], preferred_element_type=jnp.float32) + rb2[...], 0.0)
        # Final Linear(H//2, 1): VPU multiply + lane reduction (avoid 1-column MXU matmul).
        pred = jnp.sum(a2 * rw3t[...], axis=-1, keepdims=True) + rb3[...]     # (BT, 1)

        # ---- Pack both results into one lane-dense slab: features in lanes [0, H),
        # prediction at lane H, zero padding after — single unmasked 128-lane writeback.
        Wp = out_ref.shape[1]
        pad = jnp.zeros((BT, Wp - H - 1), jnp.float32)
        out_ref[...] = jnp.concatenate([feat, pred, pad], axis=-1)

    return kernel


# ----------------------------------------------------------------------------
# Wrapper: pad batch, transpose to time-major, build the stacked wavefront weight,
# run the fused kernel, unpack/slice the packed output.
# ----------------------------------------------------------------------------
def _forward_impl(src_btd, params):
    src = src_btd.astype(jnp.float32)
    B, T, D = src.shape
    lstm = params["lstm"]
    n_layers = len(lstm)
    H = lstm[0]["w_hh_t"].shape[0]
    G = 4 * H

    # Batch padding / tiling: single tile for small B; 128-row tiles with a parallel
    # grid for large B (megacore-shardable on v7x).
    if B <= 256:
        BT = max(8, _round_up(B, 8))
        Bp = BT
    else:
        BT = 128
        Bp = _round_up(B, BT)
    if Bp != B:
        src = jnp.pad(src, ((0, Bp - B), (0, 0), (0, 0)))
    src_t = jnp.transpose(src, (1, 0, 2))               # (T, Bp, D) time-major

    # Stacked wavefront weight: rows = [h_0 | h_1 | ... | h_{L-1}], column block l holds
    # layer l's gates: W_hh_l on its own rows, W_ih_l on layer (l-1)'s rows, zeros elsewhere.
    wblk = jnp.zeros((n_layers * H, n_layers * G), jnp.float32)
    for l in range(n_layers):
        wblk = wblk.at[l * H:(l + 1) * H, l * G:(l + 1) * G].set(lstm[l]["w_hh_t"])
        if l + 1 < n_layers:
            wblk = wblk.at[l * H:(l + 1) * H, (l + 1) * G:(l + 2) * G].set(
                lstm[l + 1]["w_ih_t"])

    args = [src_t, lstm[0]["w_ih_t"], lstm[0]["bias"], wblk]
    if n_layers > 1:
        args.append(jnp.concatenate([lstm[l]["bias"] for l in range(1, n_layers)], axis=-1))
    r = params["regressor"]
    args += [r["w1"], r["b1"], r["w2"], r["b2"], r["w3_t"], r["b3"]]

    Wp = _round_up(H + 1, 128)                          # packed, lane-dense output width
    full2d = lambda i: (0, 0)
    in_specs = [pl.BlockSpec((T, BT, D), lambda i: (0, i, 0))]
    in_specs += [pl.BlockSpec(a.shape, full2d) for a in args[1:]]

    out = pl.pallas_call(
        _make_fused_kernel(n_layers),
        out_shape=jax.ShapeDtypeStruct((Bp, Wp), jnp.float32),
        grid_spec=pltpu.PrefetchScalarGridSpec(
            num_scalar_prefetch=0,
            grid=(Bp // BT,),
            in_specs=in_specs,
            out_specs=pl.BlockSpec((BT, Wp), lambda i: (i, 0)),
        ),
        compiler_params=pltpu.CompilerParams(dimension_semantics=("parallel",)),
    )(*args)

    preds = out[:B, H:H + 1]
    feats = out[:B, :H]
    return preds, feats


mixup_rul_forward = jax.jit(_forward_impl)


# ----------------------------------------------------------------------------
# Parameter construction (deterministic, PyTorch-style uniform(-k, k) init),
# stored in kernel layout: transposed weights, fused bias (b_ih + b_hh),
# regressor weights as (in, out), final layer as a (1, H//2) row vector.
# ----------------------------------------------------------------------------
def init_params(key, input_dim, hidden_dim, n_layers):
    k = 1.0 / np.sqrt(hidden_dim)

    def u(key, shape):
        return jax.random.uniform(key, shape, jnp.float32, minval=-k, maxval=k)

    params = {"lstm": []}
    for layer in range(n_layers):
        d_in = input_dim if layer == 0 else hidden_dim
        key, k1, k2, k3, k4 = jax.random.split(key, 5)
        w_ih = u(k1, (4 * hidden_dim, d_in))       # PyTorch shape (4H, D)
        w_hh = u(k2, (4 * hidden_dim, hidden_dim))
        b_ih = u(k3, (4 * hidden_dim,))
        b_hh = u(k4, (4 * hidden_dim,))
        params["lstm"].append({
            "w_ih_t": w_ih.T,                                   # (D, 4H)
            "w_hh_t": w_hh.T,                                   # (H, 4H)
            "bias": (b_ih + b_hh).reshape(1, 4 * hidden_dim),   # (1, 4H)
        })

    key, k1, k2, k3, k4, k5, k6 = jax.random.split(key, 7)
    H = hidden_dim
    params["regressor"] = {
        "w1": u(k1, (H, H)),            # (in, out)
        "b1": u(k2, (1, H)),
        "w2": u(k3, (H, H // 2)),
        "b2": u(k4, (1, H // 2)),
        "w3_t": u(k5, (1, H // 2)),     # final Linear weight, row-vector layout
        "b3": u(k6, (1, 1)),
    }
    return params


# ----------------------------------------------------------------------------
# Pure-JAX reference (sanity check).
# ----------------------------------------------------------------------------
def reference_forward(src_btd, params, hidden_dim):
    x = jnp.transpose(src_btd, (1, 0, 2)).astype(jnp.float32)   # (T, B, D)
    B = x.shape[1]
    H = hidden_dim
    for lp in params["lstm"]:
        def step(carry, x_t, lp=lp):
            h, c = carry
            gates = x_t @ lp["w_ih_t"] + h @ lp["w_hh_t"] + lp["bias"]
            i = jax.nn.sigmoid(gates[:, 0 * H:1 * H])
            f = jax.nn.sigmoid(gates[:, 1 * H:2 * H])
            g = jnp.tanh(gates[:, 2 * H:3 * H])
            o = jax.nn.sigmoid(gates[:, 3 * H:4 * H])
            c = f * c + i * g
            h = o * jnp.tanh(c)
            return (h, c), h
        init = (jnp.zeros((B, H), jnp.float32), jnp.zeros((B, H), jnp.float32))
        _, x = lax.scan(step, init, x)
    features = x[-1]
    r = params["regressor"]
    h1 = jnp.maximum(features @ r["w1"] + r["b1"], 0.0)
    h2 = jnp.maximum(h1 @ r["w2"] + r["b2"], 0.0)
    preds = h2 @ r["w3_t"].T + r["b3"]
    return preds, features


if __name__ == "__main__":
    # Small shapes consistent with the module (bid=False, dropout inactive at inference).
    B, T = 4, 8
    input_dim, hidden_dim, n_layers = 16, 32, 2

    key = jax.random.PRNGKey(0)
    k_param, k_data = jax.random.split(key)
    params = init_params(k_param, input_dim, hidden_dim, n_layers)
    src = jax.random.normal(k_data, (B, T, input_dim), dtype=jnp.float32)

    preds, feats = mixup_rul_forward(src, params)
    preds, feats = jax.block_until_ready((preds, feats))

    ref_preds, ref_feats = reference_forward(src, params, hidden_dim)
    assert preds.shape == (B, 1) and feats.shape == (B, hidden_dim)
    np.testing.assert_allclose(np.asarray(feats), np.asarray(ref_feats),
                               rtol=1e-2, atol=1e-3)
    np.testing.assert_allclose(np.asarray(preds), np.asarray(ref_preds),
                               rtol=1e-2, atol=1e-3)

    print("KERNEL_OK")
</pallas_src>

<mosaic_0001>
module attributes {stable_mosaic.version = 11 : i64} {
  func.func @kernel(%arg0: i32, %arg1: memref<8x8x16xf32, #tpu.memory_space<vmem>>, %arg2: memref<16x128xf32, #tpu.memory_space<vmem>>, %arg3: memref<1x128xf32, #tpu.memory_space<vmem>>, %arg4: memref<64x256xf32, #tpu.memory_space<vmem>>, %arg5: memref<1x128xf32, #tpu.memory_space<vmem>>, %arg6: memref<32x32xf32, #tpu.memory_space<vmem>>, %arg7: memref<1x32xf32, #tpu.memory_space<vmem>>, %arg8: memref<32x16xf32, #tpu.memory_space<vmem>>, %arg9: memref<1x16xf32, #tpu.memory_space<vmem>>, %arg10: memref<1x16xf32, #tpu.memory_space<vmem>>, %arg11: memref<1x1xf32, #tpu.memory_space<vmem>>, %arg12: memref<8x128xf32, #tpu.memory_space<vmem>>) attributes {dimension_semantics = [#tpu.dimension_semantics<parallel>], iteration_bounds = array<i64: 1>, scalar_prefetch = 0 : i64, scratch_operands = 0 : i64, tpu.core_type = #tpu.core_type<tc>, window_params = [{transform_indices = @transform_0, window_bounds = array<i64: 8, 8, 16>}, {pipeline_mode = #tpu.pipeline_mode<synchronous>, transform_indices = @transform_1, window_bounds = array<i64: 16, 128>}, {pipeline_mode = #tpu.pipeline_mode<synchronous>, transform_indices = @transform_2, window_bounds = array<i64: 1, 128>}, {pipeline_mode = #tpu.pipeline_mode<synchronous>, transform_indices = @transform_3, window_bounds = array<i64: 64, 256>}, {pipeline_mode = #tpu.pipeline_mode<synchronous>, transform_indices = @transform_4, window_bounds = array<i64: 1, 128>}, {pipeline_mode = #tpu.pipeline_mode<synchronous>, transform_indices = @transform_5, window_bounds = array<i64: 32, 32>}, {pipeline_mode = #tpu.pipeline_mode<synchronous>, transform_indices = @transform_6, window_bounds = array<i64: 1, 32>}, {pipeline_mode = #tpu.pipeline_mode<synchronous>, transform_indices = @transform_7, window_bounds = array<i64: 32, 16>}, {pipeline_mode = #tpu.pipeline_mode<synchronous>, transform_indices = @transform_8, window_bounds = array<i64: 1, 16>}, {pipeline_mode = #tpu.pipeline_mode<synchronous>, transform_indices = @transform_9, window_bounds = array<i64: 1, 16>}, {pipeline_mode = #tpu.pipeline_mode<synchronous>, transform_indices = @transform_10, window_bounds = array<i64: 1, 1>}, {transform_indices = @transform_11, window_bounds = array<i64: 8, 128>}]} {
    %c0 = arith.constant 0 : index
    %c0_0 = arith.constant 0 : index
    %c0_1 = arith.constant 0 : index
    %0 = vector.load %arg1[%c0, %c0_0, %c0_1] : memref<8x8x16xf32, #tpu.memory_space<vmem>>, vector<8x8x16xf32>
    %1 = vector.shape_cast %0 : vector<8x8x16xf32> to vector<64x16xf32>
    %c0_2 = arith.constant 0 : index
    %c0_3 = arith.constant 0 : index
    %2 = vector.load %arg2[%c0_2, %c0_3] : memref<16x128xf32, #tpu.memory_space<vmem>>, vector<16x128xf32>
    %cst = arith.constant dense<0.000000e+00> : vector<64x128xf32>
    %3 = tpu.matmul %1, %2, %cst {dimension_numbers = #tpu.dot_dimension_numbers<[1], [0], [0], [1], [0, 0, 1, 1], [], []>} : vector<64x16xf32>, vector<16x128xf32>, vector<64x128xf32> -> vector<64x128xf32>
    %c0_4 = arith.constant 0 : index
    %c0_5 = arith.constant 0 : index
    %4 = vector.load %arg3[%c0_4, %c0_5] : memref<1x128xf32, #tpu.memory_space<vmem>>, vector<1x128xf32>
    %5 = vector.broadcast %4 : vector<1x128xf32> to vector<64x128xf32>
    %6 = arith.addf %3, %5 : vector<64x128xf32>
    %c0_6 = arith.constant 0 : index
    %c0_7 = arith.constant 0 : index
    %7 = vector.load %arg4[%c0_6, %c0_7] : memref<64x256xf32, #tpu.memory_space<vmem>>, vector<64x256xf32>
    %c0_8 = arith.constant 0 : index
    %c0_9 = arith.constant 0 : index
    %8 = vector.load %arg5[%c0_8, %c0_9] : memref<1x128xf32, #tpu.memory_space<vmem>>, vector<1x128xf32>
    %cst_10 = arith.constant 0.000000e+00 : f32
    %9 = vector.broadcast %cst_10 : f32 to vector<8x32xf32>
    %cst_11 = arith.constant 0.000000e+00 : f32
    %10 = vector.broadcast %cst_11 : f32 to vector<8x32xf32>
    %cst_12 = arith.constant 0.000000e+00 : f32
    %11 = vector.broadcast %cst_12 : f32 to vector<8x32xf32>
    %cst_13 = arith.constant 0.000000e+00 : f32
    %12 = vector.broadcast %cst_13 : f32 to vector<8x32xf32>
    %13 = tpu.concatenate %9, %10 in 1 : vector<8x32xf32>, vector<8x32xf32> -> vector<8x64xf32>
    %cst_14 = arith.constant dense<0.000000e+00> : vector<8x256xf32>
    %14 = tpu.matmul %13, %7, %cst_14 {dimension_numbers = #tpu.dot_dimension_numbers<[1], [0], [0], [1], [0, 0, 1, 1], [], []>} : vector<8x64xf32>, vector<64x256xf32>, vector<8x256xf32> -> vector<8x256xf32>
    %15 = vector.extract_strided_slice %14 {offsets = [0, 0], sizes = [8, 128], strides = [1, 1]} : vector<8x256xf32> to vector<8x128xf32>
    %16 = vector.extract_strided_slice %6 {offsets = [0, 0], sizes = [8, 128], strides = [1, 1]} : vector<64x128xf32> to vector<8x128xf32>
    %17 = arith.addf %15, %16 : vector<8x128xf32>
    %18 = arith.negf %17 : vector<8x128xf32>
    %19 = math.exp %18 : vector<8x128xf32>
    %cst_15 = arith.constant 1.000000e+00 : f32
    %20 = vector.broadcast %cst_15 : f32 to vector<8x128xf32>
    %21 = arith.addf %20, %19 : vector<8x128xf32>
    %22 = arith.divf %20, %21 : vector<8x128xf32>
    %23 = vector.extract_strided_slice %17 {offsets = [0, 64], sizes = [8, 32], strides = [1, 1]} : vector<8x128xf32> to vector<8x32xf32>
    %24 = math.tanh %23 : vector<8x32xf32>
    %25 = vector.extract_strided_slice %22 {offsets = [0, 32], sizes = [8, 32], strides = [1, 1]} : vector<8x128xf32> to vector<8x32xf32>
    %26 = arith.mulf %25, %11 : vector<8x32xf32>
    %27 = vector.extract_strided_slice %22 {offsets = [0, 0], sizes = [8, 32], strides = [1, 1]} : vector<8x128xf32> to vector<8x32xf32>
    %28 = arith.mulf %27, %24 : vector<8x32xf32>
    %29 = arith.addf %26, %28 : vector<8x32xf32>
    %30 = vector.extract_strided_slice %22 {offsets = [0, 96], sizes = [8, 32], strides = [1, 1]} : vector<8x128xf32> to vector<8x32xf32>
    %31 = math.tanh %29 : vector<8x32xf32>
    %32 = arith.mulf %30, %31 : vector<8x32xf32>
    %33 = tpu.concatenate %32, %10 in 1 : vector<8x32xf32>, vector<8x32xf32> -> vector<8x64xf32>
    %cst_16 = arith.constant dense<0.000000e+00> : vector<8x256xf32>
    %34 = tpu.matmul %33, %7, %cst_16 {dimension_numbers = #tpu.dot_dimension_numbers<[1], [0], [0], [1], [0, 0, 1, 1], [], []>} : vector<8x64xf32>, vector<64x256xf32>, vector<8x256xf32> -> vector<8x256xf32>
    %35 = vector.extract_strided_slice %34 {offsets = [0, 0], sizes = [8, 128], strides = [1, 1]} : vector<8x256xf32> to vector<8x128xf32>
    %36 = vector.extract_strided_slice %6 {offsets = [8, 0], sizes = [8, 128], strides = [1, 1]} : vector<64x128xf32> to vector<8x128xf32>
    %37 = arith.addf %35, %36 : vector<8x128xf32>
    %38 = arith.negf %37 : vector<8x128xf32>
    %39 = math.exp %38 : vector<8x128xf32>
    %cst_17 = arith.constant 1.000000e+00 : f32
    %40 = vector.broadcast %cst_17 : f32 to vector<8x128xf32>
    %41 = arith.addf %40, %39 : vector<8x128xf32>
    %42 = arith.divf %40, %41 : vector<8x128xf32>
    %43 = vector.extract_strided_slice %37 {offsets = [0, 64], sizes = [8, 32], strides = [1, 1]} : vector<8x128xf32> to vector<8x32xf32>
    %44 = math.tanh %43 : vector<8x32xf32>
    %45 = vector.extract_strided_slice %42 {offsets = [0, 32], sizes = [8, 32], strides = [1, 1]} : vector<8x128xf32> to vector<8x32xf32>
    %46 = arith.mulf %45, %29 : vector<8x32xf32>
    %47 = vector.extract_strided_slice %42 {offsets = [0, 0], sizes = [8, 32], strides = [1, 1]} : vector<8x128xf32> to vector<8x32xf32>
    %48 = arith.mulf %47, %44 : vector<8x32xf32>
    %49 = arith.addf %46, %48 : vector<8x32xf32>
    %50 = vector.extract_strided_slice %42 {offsets = [0, 96], sizes = [8, 32], strides = [1, 1]} : vector<8x128xf32> to vector<8x32xf32>
    %51 = math.tanh %49 : vector<8x32xf32>
    %52 = arith.mulf %50, %51 : vector<8x32xf32>
    %53 = vector.extract_strided_slice %34 {offsets = [0, 128], sizes = [8, 128], strides = [1, 1]} : vector<8x256xf32> to vector<8x128xf32>
    %54 = vector.broadcast %8 : vector<1x128xf32> to vector<8x128xf32>
    %55 = arith.addf %53, %54 : vector<8x128xf32>
    %56 = arith.negf %55 : vector<8x128xf32>
    %57 = math.exp %56 : vector<8x128xf32>
    %cst_18 = arith.constant 1.000000e+00 : f32
    %58 = vector.broadcast %cst_18 : f32 to vector<8x128xf32>
    %59 = arith.addf %58, %57 : vector<8x128xf32>
    %60 = arith.divf %58, %59 : vector<8x128xf32>
    %61 = vector.extract_strided_slice %55 {offsets = [0, 64], sizes = [8, 32], strides = [1, 1]} : vector<8x128xf32> to vector<8x32xf32>
    %62 = math.tanh %61 : vector<8x32xf32>
    %63 = vector.extract_strided_slice %60 {offsets = [0, 32], sizes = [8, 32], strides = [1, 1]} : vector<8x128xf32> to vector<8x32xf32>
    %64 = arith.mulf %63, %12 : vector<8x32xf32>
    %65 = vector.extract_strided_slice %60 {offsets = [0, 0], sizes = [8, 32], strides = [1, 1]} : vector<8x128xf32> to vector<8x32xf32>
    %66 = arith.mulf %65, %62 : vector<8x32xf32>
    %67 = arith.addf %64, %66 : vector<8x32xf32>
    %68 = vector.extract_strided_slice %60 {offsets = [0, 96], sizes = [8, 32], strides = [1, 1]} : vector<8x128xf32> to vector<8x32xf32>
    %69 = math.tanh %67 : vector<8x32xf32>
    %70 = arith.mulf %68, %69 : vector<8x32xf32>
    %71 = tpu.concatenate %52, %70 in 1 : vector<8x32xf32>, vector<8x32xf32> -> vector<8x64xf32>
    %cst_19 = arith.constant dense<0.000000e+00> : vector<8x256xf32>
    %72 = tpu.matmul %71, %7, %cst_19 {dimension_numbers = #tpu.dot_dimension_numbers<[1], [0], [0], [1], [0, 0, 1, 1], [], []>} : vector<8x64xf32>, vector<64x256xf32>, vector<8x256xf32> -> vector<8x256xf32>
    %73 = vector.extract_strided_slice %72 {offsets = [0, 0], sizes = [8, 128], strides = [1, 1]} : vector<8x256xf32> to vector<8x128xf32>
    %74 = vector.extract_strided_slice %6 {offsets = [16, 0], sizes = [8, 128], strides = [1, 1]} : vector<64x128xf32> to vector<8x128xf32>
    %75 = arith.addf %73, %74 : vector<8x128xf32>
    %76 = arith.negf %75 : vector<8x128xf32>
    %77 = math.exp %76 : vector<8x128xf32>
    %cst_20 = arith.constant 1.000000e+00 : f32
    %78 = vector.broadcast %cst_20 : f32 to vector<8x128xf32>
    %79 = arith.addf %78, %77 : vector<8x128xf32>
    %80 = arith.divf %78, %79 : vector<8x128xf32>
    %81 = vector.extract_strided_slice %75 {offsets = [0, 64], sizes = [8, 32], strides = [1, 1]} : vector<8x128xf32> to vector<8x32xf32>
    %82 = math.tanh %81 : vector<8x32xf32>
    %83 = vector.extract_strided_slice %80 {offsets = [0, 32], sizes = [8, 32], strides = [1, 1]} : vector<8x128xf32> to vector<8x32xf32>
    %84 = arith.mulf %83, %49 : vector<8x32xf32>
    %85 = vector.extract_strided_slice %80 {offsets = [0, 0], sizes = [8, 32], strides = [1, 1]} : vector<8x128xf32> to vector<8x32xf32>
    %86 = arith.mulf %85, %82 : vector<8x32xf32>
    %87 = arith.addf %84, %86 : vector<8x32xf32>
    %88 = vector.extract_strided_slice %80 {offsets = [0, 96], sizes = [8, 32], strides = [1, 1]} : vector<8x128xf32> to vector<8x32xf32>
    %89 = math.tanh %87 : vector<8x32xf32>
    %90 = arith.mulf %88, %89 : vector<8x32xf32>
    %91 = vector.extract_strided_slice %72 {offsets = [0, 128], sizes = [8, 128], strides = [1, 1]} : vector<8x256xf32> to vector<8x128xf32>
    %92 = vector.broadcast %8 : vector<1x128xf32> to vector<8x128xf32>
    %93 = arith.addf %91, %92 : vector<8x128xf32>
    %94 = arith.negf %93 : vector<8x128xf32>
    %95 = math.exp %94 : vector<8x128xf32>
    %cst_21 = arith.constant 1.000000e+00 : f32
    %96 = vector.broadcast %cst_21 : f32 to vector<8x128xf32>
    %97 = arith.addf %96, %95 : vector<8x128xf32>
    %98 = arith.divf %96, %97 : vector<8x128xf32>
    %99 = vector.extract_strided_slice %93 {offsets = [0, 64], sizes = [8, 32], strides = [1, 1]} : vector<8x128xf32> to vector<8x32xf32>
    %100 = math.tanh %99 : vector<8x32xf32>
    %101 = vector.extract_strided_slice %98 {offsets = [0, 32], sizes = [8, 32], strides = [1, 1]} : vector<8x128xf32> to vector<8x32xf32>
    %102 = arith.mulf %101, %67 : vector<8x32xf32>
    %103 = vector.extract_strided_slice %98 {offsets = [0, 0], sizes = [8, 32], strides = [1, 1]} : vector<8x128xf32> to vector<8x32xf32>
    %104 = arith.mulf %103, %100 : vector<8x32xf32>
    %105 = arith.addf %102, %104 : vector<8x32xf32>
    %106 = vector.extract_strided_slice %98 {offsets = [0, 96], sizes = [8, 32], strides = [1, 1]} : vector<8x128xf32> to vector<8x32xf32>
    %107 = math.tanh %105 : vector<8x32xf32>
    %108 = arith.mulf %106, %107 : vector<8x32xf32>
    %109 = tpu.concatenate %90, %108 in 1 : vector<8x32xf32>, vector<8x32xf32> -> vector<8x64xf32>
    %cst_22 = arith.constant dense<0.000000e+00> : vector<8x256xf32>
    %110 = tpu.matmul %109, %7, %cst_22 {dimension_numbers = #tpu.dot_dimension_numbers<[1], [0], [0], [1], [0, 0, 1, 1], [], []>} : vector<8x64xf32>, vector<64x256xf32>, vector<8x256xf32> -> vector<8x256xf32>
    %111 = vector.extract_strided_slice %110 {offsets = [0, 0], sizes = [8, 128], strides = [1, 1]} : vector<8x256xf32> to vector<8x128xf32>
    %112 = vector.extract_strided_slice %6 {offsets = [24, 0], sizes = [8, 128], strides = [1, 1]} : vector<64x128xf32> to vector<8x128xf32>
    %113 = arith.addf %111, %112 : vector<8x128xf32>
    %114 = arith.negf %113 : vector<8x128xf32>
    %115 = math.exp %114 : vector<8x128xf32>
    %cst_23 = arith.constant 1.000000e+00 : f32
    %116 = vector.broadcast %cst_23 : f32 to vector<8x128xf32>
    %117 = arith.addf %116, %115 : vector<8x128xf32>
    %118 = arith.divf %116, %117 : vector<8x128xf32>
    %119 = vector.extract_strided_slice %113 {offsets = [0, 64], sizes = [8, 32], strides = [1, 1]} : vector<8x128xf32> to vector<8x32xf32>
    %120 = math.tanh %119 : vector<8x32xf32>
    %121 = vector.extract_strided_slice %118 {offsets = [0, 32], sizes = [8, 32], strides = [1, 1]} : vector<8x128xf32> to vector<8x32xf32>
    %122 = arith.mulf %121, %87 : vector<8x32xf32>
    %123 = vector.extract_strided_slice %118 {offsets = [0, 0], sizes = [8, 32], strides = [1, 1]} : vector<8x128xf32> to vector<8x32xf32>
    %124 = arith.mulf %123, %120 : vector<8x32xf32>
    %125 = arith.addf %122, %124 : vector<8x32xf32>
    %126 = vector.extract_strided_slice %118 {offsets = [0, 96], sizes = [8, 32], strides = [1, 1]} : vector<8x128xf32> to vector<8x32xf32>
    %127 = math.tanh %125 : vector<8x32xf32>
    %128 = arith.mulf %126, %127 : vector<8x32xf32>
    %129 = vector.extract_strided_slice %110 {offsets = [0, 128], sizes = [8, 128], strides = [1, 1]} : vector<8x256xf32> to vector<8x128xf32>
    %130 = vector.broadcast %8 : vector<1x128xf32> to vector<8x128xf32>
    %131 = arith.addf %129, %130 : vector<8x128xf32>
    %132 = arith.negf %131 : vector<8x128xf32>
    %133 = math.exp %132 : vector<8x128xf32>
    %cst_24 = arith.constant 1.000000e+00 : f32
    %134 = vector.broadcast %cst_24 : f32 to vector<8x128xf32>
    %135 = arith.addf %134, %133 : vector<8x128xf32>
    %136 = arith.divf %134, %135 : vector<8x128xf32>
    %137 = vector.extract_strided_slice %131 {offsets = [0, 64], sizes = [8, 32], strides = [1, 1]} : vector<8x128xf32> to vector<8x32xf32>
    %138 = math.tanh %137 : vector<8x32xf32>
    %139 = vector.extract_strided_slice %136 {offsets = [0, 32], sizes = [8, 32], strides = [1, 1]} : vector<8x128xf32> to vector<8x32xf32>
    %140 = arith.mulf %139, %105 : vector<8x32xf32>
    %141 = vector.extract_strided_slice %136 {offsets = [0, 0], sizes = [8, 32], strides = [1, 1]} : vector<8x128xf32> to vector<8x32xf32>
    %142 = arith.mulf %141, %138 : vector<8x32xf32>
    %143 = arith.addf %140, %142 : vector<8x32xf32>
    %144 = vector.extract_strided_slice %136 {offsets = [0, 96], sizes = [8, 32], strides = [1, 1]} : vector<8x128xf32> to vector<8x32xf32>
    %145 = math.tanh %143 : vector<8x32xf32>
    %146 = arith.mulf %144, %145 : vector<8x32xf32>
    %147 = tpu.concatenate %128, %146 in 1 : vector<8x32xf32>, vector<8x32xf32> -> vector<8x64xf32>
    %cst_25 = arith.constant dense<0.000000e+00> : vector<8x256xf32>
    %148 = tpu.matmul %147, %7, %cst_25 {dimension_numbers = #tpu.dot_dimension_numbers<[1], [0], [0], [1], [0, 0, 1, 1], [], []>} : vector<8x64xf32>, vector<64x256xf32>, vector<8x256xf32> -> vector<8x256xf32>
    %149 = vector.extract_strided_slice %148 {offsets = [0, 0], sizes = [8, 128], strides = [1, 1]} : vector<8x256xf32> to vector<8x128xf32>
    %150 = vector.extract_strided_slice %6 {offsets = [32, 0], sizes = [8, 128], strides = [1, 1]} : vector<64x128xf32> to vector<8x128xf32>
    %151 = arith.addf %149, %150 : vector<8x128xf32>
    %152 = arith.negf %151 : vector<8x128xf32>
    %153 = math.exp %152 : vector<8x128xf32>
    %cst_26 = arith.constant 1.000000e+00 : f32
    %154 = vector.broadcast %cst_26 : f32 to vector<8x128xf32>
    %155 = arith.addf %154, %153 : vector<8x128xf32>
    %156 = arith.divf %154, %155 : vector<8x128xf32>
    %157 = vector.extract_strided_slice %151 {offsets = [0, 64], sizes = [8, 32], strides = [1, 1]} : vector<8x128xf32> to vector<8x32xf32>
    %158 = math.tanh %157 : vector<8x32xf32>
    %159 = vector.extract_strided_slice %156 {offsets = [0, 32], sizes = [8, 32], strides = [1, 1]} : vector<8x128xf32> to vector<8x32xf32>
    %160 = arith.mulf %159, %125 : vector<8x32xf32>
    %161 = vector.extract_strided_slice %156 {offsets = [0, 0], sizes = [8, 32], strides = [1, 1]} : vector<8x128xf32> to vector<8x32xf32>
    %162 = arith.mulf %161, %158 : vector<8x32xf32>
    %163 = arith.addf %160, %162 : vector<8x32xf32>
    %164 = vector.extract_strided_slice %156 {offsets = [0, 96], sizes = [8, 32], strides = [1, 1]} : vector<8x128xf32> to vector<8x32xf32>
    %165 = math.tanh %163 : vector<8x32xf32>
    %166 = arith.mulf %164, %165 : vector<8x32xf32>
    %167 = vector.extract_strided_slice %148 {offsets = [0, 128], sizes = [8, 128], strides = [1, 1]} : vector<8x256xf32> to vector<8x128xf32>
    %168 = vector.broadcast %8 : vector<1x128xf32> to vector<8x128xf32>
    %169 = arith.addf %167, %168 : vector<8x128xf32>
    %170 = arith.negf %169 : vector<8x128xf32>
    %171 = math.exp %170 : vector<8x128xf32>
    %cst_27 = arith.constant 1.000000e+00 : f32
    %172 = vector.broadcast %cst_27 : f32 to vector<8x128xf32>
    %173 = arith.addf %172, %171 : vector<8x128xf32>
    %174 = arith.divf %172, %173 : vector<8x128xf32>
    %175 = vector.extract_strided_slice %169 {offsets = [0, 64], sizes = [8, 32], strides = [1, 1]} : vector<8x128xf32> to vector<8x32xf32>
    %176 = math.tanh %175 : vector<8x32xf32>
    %177 = vector.extract_strided_slice %174 {offsets = [0, 32], sizes = [8, 32], strides = [1, 1]} : vector<8x128xf32> to vector<8x32xf32>
    %178 = arith.mulf %177, %143 : vector<8x32xf32>
    %179 = vector.extract_strided_slice %174 {offsets = [0, 0], sizes = [8, 32], strides = [1, 1]} : vector<8x128xf32> to vector<8x32xf32>
    %180 = arith.mulf %179, %176 : vector<8x32xf32>
    %181 = arith.addf %178, %180 : vector<8x32xf32>
    %182 = vector.extract_strided_slice %174 {offsets = [0, 96], sizes = [8, 32], strides = [1, 1]} : vector<8x128xf32> to vector<8x32xf32>
    %183 = math.tanh %181 : vector<8x32xf32>
    %184 = arith.mulf %182, %183 : vector<8x32xf32>
    %185 = tpu.concatenate %166, %184 in 1 : vector<8x32xf32>, vector<8x32xf32> -> vector<8x64xf32>
    %cst_28 = arith.constant dense<0.000000e+00> : vector<8x256xf32>
    %186 = tpu.matmul %185, %7, %cst_28 {dimension_numbers = #tpu.dot_dimension_numbers<[1], [0], [0], [1], [0, 0, 1, 1], [], []>} : vector<8x64xf32>, vector<64x256xf32>, vector<8x256xf32> -> vector<8x256xf32>
    %187 = vector.extract_strided_slice %186 {offsets = [0, 0], sizes = [8, 128], strides = [1, 1]} : vector<8x256xf32> to vector<8x128xf32>
    %188 = vector.extract_strided_slice %6 {offsets = [40, 0], sizes = [8, 128], strides = [1, 1]} : vector<64x128xf32> to vector<8x128xf32>
    %189 = arith.addf %187, %188 : vector<8x128xf32>
    %190 = arith.negf %189 : vector<8x128xf32>
    %191 = math.exp %190 : vector<8x128xf32>
    %cst_29 = arith.constant 1.000000e+00 : f32
    %192 = vector.broadcast %cst_29 : f32 to vector<8x128xf32>
    %193 = arith.addf %192, %191 : vector<8x128xf32>
    %194 = arith.divf %192, %193 : vector<8x128xf32>
    %195 = vector.extract_strided_slice %189 {offsets = [0, 64], sizes = [8, 32], strides = [1, 1]} : vector<8x128xf32> to vector<8x32xf32>
    %196 = math.tanh %195 : vector<8x32xf32>
    %197 = vector.extract_strided_slice %194 {offsets = [0, 32], sizes = [8, 32], strides = [1, 1]} : vector<8x128xf32> to vector<8x32xf32>
    %198 = arith.mulf %197, %163 : vector<8x32xf32>
    %199 = vector.extract_strided_slice %194 {offsets = [0, 0], sizes = [8, 32], strides = [1, 1]} : vector<8x128xf32> to vector<8x32xf32>
    %200 = arith.mulf %199, %196 : vector<8x32xf32>
    %201 = arith.addf %198, %200 : vector<8x32xf32>
    %202 = vector.extract_strided_slice %194 {offsets = [0, 96], sizes = [8, 32], strides = [1, 1]} : vector<8x128xf32> to vector<8x32xf32>
    %203 = math.tanh %201 : vector<8x32xf32>
    %204 = arith.mulf %202, %203 : vector<8x32xf32>
    %205 = vector.extract_strided_slice %186 {offsets = [0, 128], sizes = [8, 128], strides = [1, 1]} : vector<8x256xf32> to vector<8x128xf32>
    %206 = vector.broadcast %8 : vector<1x128xf32> to vector<8x128xf32>
    %207 = arith.addf %205, %206 : vector<8x128xf32>
    %208 = arith.negf %207 : vector<8x128xf32>
    %209 = math.exp %208 : vector<8x128xf32>
    %cst_30 = arith.constant 1.000000e+00 : f32
    %210 = vector.broadcast %cst_30 : f32 to vector<8x128xf32>
    %211 = arith.addf %210, %209 : vector<8x128xf32>
    %212 = arith.divf %210, %211 : vector<8x128xf32>
    %213 = vector.extract_strided_slice %207 {offsets = [0, 64], sizes = [8, 32], strides = [1, 1]} : vector<8x128xf32> to vector<8x32xf32>
    %214 = math.tanh %213 : vector<8x32xf32>
    %215 = vector.extract_strided_slice %212 {offsets = [0, 32], sizes = [8, 32], strides = [1, 1]} : vector<8x128xf32> to vector<8x32xf32>
    %216 = arith.mulf %215, %181 : vector<8x32xf32>
    %217 = vector.extract_strided_slice %212 {offsets = [0, 0], sizes = [8, 32], strides = [1, 1]} : vector<8x128xf32> to vector<8x32xf32>
    %218 = arith.mulf %217, %214 : vector<8x32xf32>
    %219 = arith.addf %216, %218 : vector<8x32xf32>
    %220 = vector.extract_strided_slice %212 {offsets = [0, 96], sizes = [8, 32], strides = [1, 1]} : vector<8x128xf32> to vector<8x32xf32>
    %221 = math.tanh %219 : vector<8x32xf32>
    %222 = arith.mulf %220, %221 : vector<8x32xf32>
    %223 = tpu.concatenate %204, %222 in 1 : vector<8x32xf32>, vector<8x32xf32> -> vector<8x64xf32>
    %cst_31 = arith.constant dense<0.000000e+00> : vector<8x256xf32>
    %224 = tpu.matmul %223, %7, %cst_31 {dimension_numbers = #tpu.dot_dimension_numbers<[1], [0], [0], [1], [0, 0, 1, 1], [], []>} : vector<8x64xf32>, vector<64x256xf32>, vector<8x256xf32> -> vector<8x256xf32>
    %225 = vector.extract_strided_slice %224 {offsets = [0, 0], sizes = [8, 128], strides = [1, 1]} : vector<8x256xf32> to vector<8x128xf32>
    %226 = vector.extract_strided_slice %6 {offsets = [48, 0], sizes = [8, 128], strides = [1, 1]} : vector<64x128xf32> to vector<8x128xf32>
    %227 = arith.addf %225, %226 : vector<8x128xf32>
    %228 = arith.negf %227 : vector<8x128xf32>
    %229 = math.exp %228 : vector<8x128xf32>
    %cst_32 = arith.constant 1.000000e+00 : f32
    %230 = vector.broadcast %cst_32 : f32 to vector<8x128xf32>
    %231 = arith.addf %230, %229 : vector<8x128xf32>
    %232 = arith.divf %230, %231 : vector<8x128xf32>
    %233 = vector.extract_strided_slice %227 {offsets = [0, 64], sizes = [8, 32], strides = [1, 1]} : vector<8x128xf32> to vector<8x32xf32>
    %234 = math.tanh %233 : vector<8x32xf32>
    %235 = vector.extract_strided_slice %232 {offsets = [0, 32], sizes = [8, 32], strides = [1, 1]} : vector<8x128xf32> to vector<8x32xf32>
    %236 = arith.mulf %235, %201 : vector<8x32xf32>
    %237 = vector.extract_strided_slice %232 {offsets = [0, 0], sizes = [8, 32], strides = [1, 1]} : vector<8x128xf32> to vector<8x32xf32>
    %238 = arith.mulf %237, %234 : vector<8x32xf32>
    %239 = arith.addf %236, %238 : vector<8x32xf32>
    %240 = vector.extract_strided_slice %232 {offsets = [0, 96], sizes = [8, 32], strides = [1, 1]} : vector<8x128xf32> to vector<8x32xf32>
    %241 = math.tanh %239 : vector<8x32xf32>
    %242 = arith.mulf %240, %241 : vector<8x32xf32>
    %243 = vector.extract_strided_slice %224 {offsets = [0, 128], sizes = [8, 128], strides = [1, 1]} : vector<8x256xf32> to vector<8x128xf32>
    %244 = vector.broadcast %8 : vector<1x128xf32> to vector<8x128xf32>
    %245 = arith.addf %243, %244 : vector<8x128xf32>
    %246 = arith.negf %245 : vector<8x128xf32>
    %247 = math.exp %246 : vector<8x128xf32>
    %cst_33 = arith.constant 1.000000e+00 : f32
    %248 = vector.broadcast %cst_33 : f32 to vector<8x128xf32>
    %249 = arith.addf %248, %247 : vector<8x128xf32>
    %250 = arith.divf %248, %249 : vector<8x128xf32>
    %251 = vector.extract_strided_slice %245 {offsets = [0, 64], sizes = [8, 32], strides = [1, 1]} : vector<8x128xf32> to vector<8x32xf32>
    %252 = math.tanh %251 : vector<8x32xf32>
    %253 = vector.extract_strided_slice %250 {offsets = [0, 32], sizes = [8, 32], strides = [1, 1]} : vector<8x128xf32> to vector<8x32xf32>
    %254 = arith.mulf %253, %219 : vector<8x32xf32>
    %255 = vector.extract_strided_slice %250 {offsets = [0, 0], sizes = [8, 32], strides = [1, 1]} : vector<8x128xf32> to vector<8x32xf32>
    %256 = arith.mulf %255, %252 : vector<8x32xf32>
    %257 = arith.addf %254, %256 : vector<8x32xf32>
    %258 = vector.extract_strided_slice %250 {offsets = [0, 96], sizes = [8, 32], strides = [1, 1]} : vector<8x128xf32> to vector<8x32xf32>
    %259 = math.tanh %257 : vector<8x32xf32>
    %260 = arith.mulf %258, %259 : vector<8x32xf32>
    %261 = tpu.concatenate %242, %260 in 1 : vector<8x32xf32>, vector<8x32xf32> -> vector<8x64xf32>
    %cst_34 = arith.constant dense<0.000000e+00> : vector<8x256xf32>
    %262 = tpu.matmul %261, %7, %cst_34 {dimension_numbers = #tpu.dot_dimension_numbers<[1], [0], [0], [1], [0, 0, 1, 1], [], []>} : vector<8x64xf32>, vector<64x256xf32>, vector<8x256xf32> -> vector<8x256xf32>
    %263 = vector.extract_strided_slice %262 {offsets = [0, 0], sizes = [8, 128], strides = [1, 1]} : vector<8x256xf32> to vector<8x128xf32>
    %264 = vector.extract_strided_slice %6 {offsets = [56, 0], sizes = [8, 128], strides = [1, 1]} : vector<64x128xf32> to vector<8x128xf32>
    %265 = arith.addf %263, %264 : vector<8x128xf32>
    %266 = arith.negf %265 : vector<8x128xf32>
    %267 = math.exp %266 : vector<8x128xf32>
    %cst_35 = arith.constant 1.000000e+00 : f32
    %268 = vector.broadcast %cst_35 : f32 to vector<8x128xf32>
    %269 = arith.addf %268, %267 : vector<8x128xf32>
    %270 = arith.divf %268, %269 : vector<8x128xf32>
    %271 = vector.extract_strided_slice %265 {offsets = [0, 64], sizes = [8, 32], strides = [1, 1]} : vector<8x128xf32> to vector<8x32xf32>
    %272 = math.tanh %271 : vector<8x32xf32>
    %273 = vector.extract_strided_slice %270 {offsets = [0, 32], sizes = [8, 32], strides = [1, 1]} : vector<8x128xf32> to vector<8x32xf32>
    %274 = arith.mulf %273, %239 : vector<8x32xf32>
    %275 = vector.extract_strided_slice %270 {offsets = [0, 0], sizes = [8, 32], strides = [1, 1]} : vector<8x128xf32> to vector<8x32xf32>
    %276 = arith.mulf %275, %272 : vector<8x32xf32>
    %277 = arith.addf %274, %276 : vector<8x32xf32>
    %278 = vector.extract_strided_slice %270 {offsets = [0, 96], sizes = [8, 32], strides = [1, 1]} : vector<8x128xf32> to vector<8x32xf32>
    %279 = math.tanh %277 : vector<8x32xf32>
    %280 = arith.mulf %278, %279 : vector<8x32xf32>
    %281 = vector.extract_strided_slice %262 {offsets = [0, 128], sizes = [8, 128], strides = [1, 1]} : vector<8x256xf32> to vector<8x128xf32>
    %282 = vector.broadcast %8 : vector<1x128xf32> to vector<8x128xf32>
    %283 = arith.addf %281, %282 : vector<8x128xf32>
    %284 = arith.negf %283 : vector<8x128xf32>
    %285 = math.exp %284 : vector<8x128xf32>
    %cst_36 = arith.constant 1.000000e+00 : f32
    %286 = vector.broadcast %cst_36 : f32 to vector<8x128xf32>
    %287 = arith.addf %286, %285 : vector<8x128xf32>
    %288 = arith.divf %286, %287 : vector<8x128xf32>
    %289 = vector.extract_strided_slice %283 {offsets = [0, 64], sizes = [8, 32], strides = [1, 1]} : vector<8x128xf32> to vector<8x32xf32>
    %290 = math.tanh %289 : vector<8x32xf32>
    %291 = vector.extract_strided_slice %288 {offsets = [0, 32], sizes = [8, 32], strides = [1, 1]} : vector<8x128xf32> to vector<8x32xf32>
    %292 = arith.mulf %291, %257 : vector<8x32xf32>
    %293 = vector.extract_strided_slice %288 {offsets = [0, 0], sizes = [8, 32], strides = [1, 1]} : vector<8x128xf32> to vector<8x32xf32>
    %294 = arith.mulf %293, %290 : vector<8x32xf32>
    %295 = arith.addf %292, %294 : vector<8x32xf32>
    %296 = vector.extract_strided_slice %288 {offsets = [0, 96], sizes = [8, 32], strides = [1, 1]} : vector<8x128xf32> to vector<8x32xf32>
    %297 = math.tanh %295 : vector<8x32xf32>
    %298 = arith.mulf %296, %297 : vector<8x32xf32>
    %299 = tpu.concatenate %280, %298 in 1 : vector<8x32xf32>, vector<8x32xf32> -> vector<8x64xf32>
    %cst_37 = arith.constant dense<0.000000e+00> : vector<8x256xf32>
    %300 = tpu.matmul %299, %7, %cst_37 {dimension_numbers = #tpu.dot_dimension_numbers<[1], [0], [0], [1], [0, 0, 1, 1], [], []>} : vector<8x64xf32>, vector<64x256xf32>, vector<8x256xf32> -> vector<8x256xf32>
    %301 = vector.extract_strided_slice %300 {offsets = [0, 128], sizes = [8, 128], strides = [1, 1]} : vector<8x256xf32> to vector<8x128xf32>
    %302 = vector.broadcast %8 : vector<1x128xf32> to vector<8x128xf32>
    %303 = arith.addf %301, %302 : vector<8x128xf32>
    %304 = arith.negf %303 : vector<8x128xf32>
    %305 = math.exp %304 : vector<8x128xf32>
    %cst_38 = arith.constant 1.000000e+00 : f32
    %306 = vector.broadcast %cst_38 : f32 to vector<8x128xf32>
    %307 = arith.addf %306, %305 : vector<8x128xf32>
    %308 = arith.divf %306, %307 : vector<8x128xf32>
    %309 = vector.extract_strided_slice %303 {offsets = [0, 64], sizes = [8, 32], strides = [1, 1]} : vector<8x128xf32> to vector<8x32xf32>
    %310 = math.tanh %309 : vector<8x32xf32>
    %311 = vector.extract_strided_slice %308 {offsets = [0, 32], sizes = [8, 32], strides = [1, 1]} : vector<8x128xf32> to vector<8x32xf32>
    %312 = arith.mulf %311, %295 : vector<8x32xf32>
    %313 = vector.extract_strided_slice %308 {offsets = [0, 0], sizes = [8, 32], strides = [1, 1]} : vector<8x128xf32> to vector<8x32xf32>
    %314 = arith.mulf %313, %310 : vector<8x32xf32>
    %315 = arith.addf %312, %314 : vector<8x32xf32>
    %316 = vector.extract_strided_slice %308 {offsets = [0, 96], sizes = [8, 32], strides = [1, 1]} : vector<8x128xf32> to vector<8x32xf32>
    %317 = math.tanh %315 : vector<8x32xf32>
    %318 = arith.mulf %316, %317 : vector<8x32xf32>
    %c0_39 = arith.constant 0 : index
    %c0_40 = arith.constant 0 : index
    %319 = vector.load %arg6[%c0_39, %c0_40] : memref<32x32xf32, #tpu.memory_space<vmem>>, vector<32x32xf32>
    %cst_41 = arith.constant dense<0.000000e+00> : vector<8x32xf32>
    %320 = tpu.matmul %318, %319, %cst_41 {dimension_numbers = #tpu.dot_dimension_numbers<[1], [0], [0], [1], [0, 0, 1, 1], [], []>} : vector<8x32xf32>, vector<32x32xf32>, vector<8x32xf32> -> vector<8x32xf32>
    %c0_42 = arith.constant 0 : index
    %c0_43 = arith.constant 0 : index
    %321 = vector.load %arg7[%c0_42, %c0_43] : memref<1x32xf32, #tpu.memory_space<vmem>>, vector<1x32xf32>
    %322 = vector.broadcast %321 : vector<1x32xf32> to vector<8x32xf32>
    %323 = arith.addf %320, %322 : vector<8x32xf32>
    %cst_44 = arith.constant 0.000000e+00 : f32
    %324 = vector.broadcast %cst_44 : f32 to vector<8x32xf32>
    %325 = arith.maximumf %323, %324 : vector<8x32xf32>
    %c0_45 = arith.constant 0 : index
    %c0_46 = arith.constant 0 : index
    %326 = vector.load %arg8[%c0_45, %c0_46] : memref<32x16xf32, #tpu.memory_space<vmem>>, vector<32x16xf32>
    %cst_47 = arith.constant dense<0.000000e+00> : vector<8x16xf32>
    %327 = tpu.matmul %325, %326, %cst_47 {dimension_numbers = #tpu.dot_dimension_numbers<[1], [0], [0], [1], [0, 0, 1, 1], [], []>} : vector<8x32xf32>, vector<32x16xf32>, vector<8x16xf32> -> vector<8x16xf32>
    %c0_48 = arith.constant 0 : index
    %c0_49 = arith.constant 0 : index
    %328 = vector.load %arg9[%c0_48, %c0_49] : memref<1x16xf32, #tpu.memory_space<vmem>>, vector<1x16xf32>
    %329 = vector.broadcast %328 : vector<1x16xf32> to vector<8x16xf32>
    %330 = arith.addf %327, %329 : vector<8x16xf32>
    %cst_50 = arith.constant 0.000000e+00 : f32
    %331 = vector.broadcast %cst_50 : f32 to vector<8x16xf32>
    %332 = arith.maximumf %330, %331 : vector<8x16xf32>
    %c0_51 = arith.constant 0 : index
    %c0_52 = arith.constant 0 : index
    %333 = vector.load %arg10[%c0_51, %c0_52] : memref<1x16xf32, #tpu.memory_space<vmem>>, vector<1x16xf32>
    %334 = vector.broadcast %333 : vector<1x16xf32> to vector<8x16xf32>
    %335 = arith.mulf %332, %334 : vector<8x16xf32>
    %cst_53 = arith.constant dense<0.000000e+00> : vector<8xf32>
    %336 = vector.multi_reduction <add>, %335, %cst_53 [1] : vector<8x16xf32> to vector<8xf32>
    %337 = vector.shape_cast %336 : vector<8xf32> to vector<8x1xf32>
    %c0_54 = arith.constant 0 : index
    %c0_55 = arith.constant 0 : index
    %338 = vector.load %arg11[%c0_54, %c0_55] : memref<1x1xf32, #tpu.memory_space<vmem>>, vector<1x1xf32>
    %339 = vector.broadcast %338 : vector<1x1xf32> to vector<8x1xf32>
    %340 = arith.addf %337, %339 : vector<8x1xf32>
    %cst_56 = arith.constant 0.000000e+00 : f32
    %341 = vector.broadcast %cst_56 : f32 to vector<8x95xf32>
    %342 = tpu.concatenate %318, %340, %341 in 1 : vector<8x32xf32>, vector<8x1xf32>, vector<8x95xf32> -> vector<8x128xf32>
    %c0_57 = arith.constant 0 : index
    %c0_58 = arith.constant 0 : index
    %343 = vector.load %arg12[%c0_57, %c0_58] : memref<8x128xf32, #tpu.memory_space<vmem>>, vector<8x128xf32>
    tpu.vector_store %arg12[%c0_57, %c0_58], %342 {strides = array<i32>} : memref<8x128xf32, #tpu.memory_space<vmem>>, vector<8x128xf32>,
    return
  }
  func.func @transform_0(%arg0: i32) -> (i32, i32, i32) {
    %c0_i32 = arith.constant 0 : i32
    %c0_i32_0 = arith.constant 0 : i32
    %c0_i32_1 = arith.constant 0 : i32
    return %c0_i32, %arg0, %c0_i32_0 : i32, i32, i32
  }
  func.func @transform_1(%arg0: i32) -> (i32, i32) {
    %c0_i32 = arith.constant 0 : i32
    %c0_i32_0 = arith.constant 0 : i32
    %c0_i32_1 = arith.constant 0 : i32
    return %c0_i32, %c0_i32_0 : i32, i32
  }
  func.func @transform_2(%arg0: i32) -> (i32, i32) {
    %c0_i32 = arith.constant 0 : i32
    %c0_i32_0 = arith.constant 0 : i32
    %c0_i32_1 = arith.constant 0 : i32
    return %c0_i32, %c0_i32_0 : i32, i32
  }
  func.func @transform_3(%arg0: i32) -> (i32, i32) {
    %c0_i32 = arith.constant 0 : i32
    %c0_i32_0 = arith.constant 0 : i32
    %c0_i32_1 = arith.constant 0 : i32
    return %c0_i32, %c0_i32_0 : i32, i32
  }
  func.func @transform_4(%arg0: i32) -> (i32, i32) {
    %c0_i32 = arith.constant 0 : i32
    %c0_i32_0 = arith.constant 0 : i32
    %c0_i32_1 = arith.constant 0 : i32
    return %c0_i32, %c0_i32_0 : i32, i32
  }
  func.func @transform_5(%arg0: i32) -> (i32, i32) {
    %c0_i32 = arith.constant 0 : i32
    %c0_i32_0 = arith.constant 0 : i32
    %c0_i32_1 = arith.constant 0 : i32
    return %c0_i32, %c0_i32_0 : i32, i32
  }
  func.func @transform_6(%arg0: i32) -> (i32, i32) {
    %c0_i32 = arith.constant 0 : i32
    %c0_i32_0 = arith.constant 0 : i32
    %c0_i32_1 = arith.constant 0 : i32
    return %c0_i32, %c0_i32_0 : i32, i32
  }
  func.func @transform_7(%arg0: i32) -> (i32, i32) {
    %c0_i32 = arith.constant 0 : i32
    %c0_i32_0 = arith.constant 0 : i32
    %c0_i32_1 = arith.constant 0 : i32
    return %c0_i32, %c0_i32_0 : i32, i32
  }
  func.func @transform_8(%arg0: i32) -> (i32, i32) {
    %c0_i32 = arith.constant 0 : i32
    %c0_i32_0 = arith.constant 0 : i32
    %c0_i32_1 = arith.constant 0 : i32
    return %c0_i32, %c0_i32_0 : i32, i32
  }
  func.func @transform_9(%arg0: i32) -> (i32, i32) {
    %c0_i32 = arith.constant 0 : i32
    %c0_i32_0 = arith.constant 0 : i32
    %c0_i32_1 = arith.constant 0 : i32
    return %c0_i32, %c0_i32_0 : i32, i32
  }
  func.func @transform_10(%arg0: i32) -> (i32, i32) {
    %c0_i32 = arith.constant 0 : i32
    %c0_i32_0 = arith.constant 0 : i32
    %c0_i32_1 = arith.constant 0 : i32
    return %c0_i32, %c0_i32_0 : i32, i32
  }
  func.func @transform_11(%arg0: i32) -> (i32, i32) {
    %c0_i32 = arith.constant 0 : i32
    %c0_i32_0 = arith.constant 0 : i32
    return %arg0, %c0_i32 : i32, i32
  }
}

</mosaic_0001>

<llo_original>
// kernel: _forward_impl.1
$region0: #{_forward_impl.1}
  #allocation0 [shape = 'u32[]', space=smem, size = 0x4, offset = 0x4, fixed_abs, tag = 'smem constant byte address 0x4 - core index']
  #allocation1 [shape = 'u32[144,128]{1,0:T(1,128)}', space=vmem, size = 0x12000, scoped, tag = 'internal scratch']
  #allocation2 [shape = 'f32[1,1]{1,0:T(1,128)S(1)}', space=vmem, size = 0x200, scoped, tag = 'scoped memory for _forward_impl.1']
  %s0 = inlined_call_operand.vmem [shape: f32[8,8,16], index: 0, kind: input, shape index: {}]
  %s1 = inlined_call_operand.vmem [shape: f32[16,128], index: 1, kind: input, shape index: {}]
  %s2 = inlined_call_operand.vmem [shape: f32[1,128], index: 2, kind: input, shape index: {}]
  %s3 = inlined_call_operand.vmem [shape: f32[64,256], index: 3, kind: input, shape index: {}]
  %s4 = inlined_call_operand.vmem [shape: f32[1,128], index: 4, kind: input, shape index: {}]
  %s5 = inlined_call_operand.vmem [shape: f32[32,32], index: 5, kind: input, shape index: {}]
  %s6 = inlined_call_operand.vmem [shape: f32[1,32], index: 6, kind: input, shape index: {}]
  %s7 = inlined_call_operand.vmem [shape: f32[32,16], index: 7, kind: input, shape index: {}]
  %s8 = inlined_call_operand.vmem [shape: f32[1,16], index: 8, kind: input, shape index: {}]
  %s9 = inlined_call_operand.vmem [shape: f32[1,16], index: 9, kind: input, shape index: {}]
  %s10 = inlined_call_operand.<no memory space> [shape: f32[1,1], index: 10, kind: input, shape index: {}]
  %s11 = inlined_call_operand.vmem [shape: f32[8,128], index: 11, kind: output, shape index: {}]
  %s12 = sld [smem:[#allocation0]]
  $region54: #{_forward_impl.1} parent=0
    _
  %s14 = ssub.s32 1, %s12
  %s15 = scalar_select 0, %s14, %s12
  %v16 = vstv %s10
  %17 = vst [vmem:[#allocation2] sm:$0x1] %v16
  // Predicated region
  $region2: #{_forward_impl.1} parent=0 // pred_check
    _
  $region3: #{_forward_impl.1} parent=0 // pred_check_branch
    %19 = sbr.rel (0) target = $region5
  $region4: #{_forward_impl.1} parent=0 // pred_region
    _
  $region5: #{_forward_impl.1} parent=0 // pred_fallthru
    _
  // Predicated region
  $region6: #{_forward_impl.1} parent=0 // pred_check
    _
  $region7: #{_forward_impl.1} parent=0 // pred_check_branch
    %21 = sbr.rel (0) target = $region9
  $region8: #{_forward_impl.1} parent=0 // pred_region
    _
  $region9: #{_forward_impl.1} parent=0 // pred_fallthru
    _
  // Predicated region
  $region10: #{_forward_impl.1} parent=0 // pred_check
    _
  $region11: #{_forward_impl.1} parent=0 // pred_check_branch
    %23 = sbr.rel (0) target = $region13
  $region12: #{_forward_impl.1} parent=0 // pred_region
    _
  $region13: #{_forward_impl.1} parent=0 // pred_fallthru
    _
  // Predicated region
  $region14: #{_forward_impl.1} parent=0 // pred_check
    _
  $region15: #{_forward_impl.1} parent=0 // pred_check_branch
    %25 = sbr.rel (0) target = $region17
  $region16: #{_forward_impl.1} parent=0 // pred_region
    _
  $region17: #{_forward_impl.1} parent=0 // pred_fallthru
    _
  // Predicated region
  $region18: #{_forward_impl.1} parent=0 // pred_check
    _
  $region19: #{_forward_impl.1} parent=0 // pred_check_branch
    %27 = sbr.rel (0) target = $region21
  $region20: #{_forward_impl.1} parent=0 // pred_region
    _
  $region21: #{_forward_impl.1} parent=0 // pred_fallthru
    _
  // Predicated region
  $region22: #{_forward_impl.1} parent=0 // pred_check
    _
  $region23: #{_forward_impl.1} parent=0 // pred_check_branch
    %29 = sbr.rel (0) target = $region25
  $region24: #{_forward_impl.1} parent=0 // pred_region
    _
  $region25: #{_forward_impl.1} parent=0 // pred_fallthru
    _
  // Predicated region
  $region26: #{_forward_impl.1} parent=0 // pred_check
    _
  $region27: #{_forward_impl.1} parent=0 // pred_check_branch
    %31 = sbr.rel (0) target = $region29
  $region28: #{_forward_impl.1} parent=0 // pred_region
    _
  $region29: #{_forward_impl.1} parent=0 // pred_fallthru
    _
  // Predicated region
  $region30: #{_forward_impl.1} parent=0 // pred_check
    _
  $region31: #{_forward_impl.1} parent=0 // pred_check_branch
    %33 = sbr.rel (0) target = $region33
  $region32: #{_forward_impl.1} parent=0 // pred_region
    _
  $region33: #{_forward_impl.1} parent=0 // pred_fallthru
    _
  // Predicated region
  $region34: #{_forward_impl.1} parent=0 // pred_check
    _
  $region35: #{_forward_impl.1} parent=0 // pred_check_branch
    %35 = sbr.rel (0) target = $region37
  $region36: #{_forward_impl.1} parent=0 // pred_region
    _
  $region37: #{_forward_impl.1} parent=0 // pred_fallthru
    _
  // Predicated region
  $region38: #{_forward_impl.1} parent=0 // pred_check
    _
  $region39: #{_forward_impl.1} parent=0 // pred_check_branch
    %37 = sbr.rel (0) target = $region41
  $region40: #{_forward_impl.1} parent=0 // pred_region
    _
  $region41: #{_forward_impl.1} parent=0 // pred_fallthru
    _
  // Predicated region
  $region42: #{_forward_impl.1} parent=0 // pred_check
    _
  $region43: #{_forward_impl.1} parent=0 // pred_check_branch
    %39 = sbr.rel (0) target = $region45
  $region44: #{_forward_impl.1} parent=0 // pred_region
    _
  $region45: #{_forward_impl.1} parent=0 // pred_fallthru
    _
  %v40 = vld [vmem:[%s0] sm:$0xff]
  %v41 = vld [vmem:[%s0 + $0x8] sm:$0xff]
  %v42 = vld [vmem:[%s0 + $0x10] sm:$0xff]
  %v43 = vld [vmem:[%s0 + $0x18] sm:$0xff]
  %v44 = vld [vmem:[%s0 + $0x20] sm:$0xff]
  %v45 = vld [vmem:[%s0 + $0x28] sm:$0xff]
  %v46 = vld [vmem:[%s0 + $0x30] sm:$0xff]
  %v47 = vld [vmem:[%s0 + $0x38] sm:$0xff]
  %v48 = vld [vmem:[%s1] sm:$0xff]
  %v49 = vld [vmem:[%s1 + $0x8] sm:$0xff]
  %v50 = vld [vmem:[%s2] sm:$0x1]
  %v52 = vlaneseq
  %v53 = vshrl.u32 %v52, 7
  %v54 = vsub.s32 0, %v53
  %v55 = vrot.slane %v50, %v54
  %vm57 = vcmask 130048
  %v59 = vsel %vm57, %v40, 0
  %v62 = vsel %vm57, %v41, 0
  %v65 = vsel %vm57, %v42, 0
  %v68 = vsel %vm57, %v43, 0
  %v71 = vsel %vm57, %v44, 0
  %v74 = vsel %vm57, %v45, 0
  %v77 = vsel %vm57, %v46, 0
  %v80 = vsel %vm57, %v47, 0
  %82 = vmatprep.subr.mxu0 0.0
  %83 = vmatpush1.msra.mxu0 0.0
  %84 = vmatprep.subr.mxu0 0.0
  %85 = vmatpush1.msra.mxu0 0.0
  %86 = vmatprep.subr.mxu0 0.0
  %87 = vmatpush1.msra.mxu0 0.0
  %88 = vmatprep.subr.mxu0 0.0
  %89 = vmatpush1.msra.mxu0 0.0
  %90 = vmatprep.subr.mxu0 0.0
  %91 = vmatpush1.msra.mxu0 0.0
  %92 = vmatprep.subr.mxu0 0.0
  %93 = vmatpush1.msra.mxu0 0.0
  %94 = vmatprep.subr.mxu0 0.0
  %95 = vmatpush1.msra.mxu0 0.0
  %96 = vmatprep.subr.mxu0 0.0
  %97 = vmatpush1.msra.mxu0 0.0
  %98 = vmatprep.subr.mxu0 0.0
  %99 = vmatpush1.msra.mxu0 0.0
  %100 = vmatprep.subr.mxu0 0.0
  %101 = vmatpush1.msra.mxu0 0.0
  %102 = vmatprep.subr.mxu0 0.0
  %103 = vmatpush1.msra.mxu0 0.0
  %104 = vmatprep.subr.mxu0 0.0
  %105 = vmatpush1.msra.mxu0 0.0
  %106 = vmatprep.subr.mxu0 0.0
  %107 = vmatpush1.msra.mxu0 0.0
  %108 = vmatprep.subr.mxu0 0.0
  %109 = vmatpush1.msra.mxu0 0.0
  %110 = vmatprep.subr.mxu0 0.0
  %111 = vmatpush1.msra.mxu0 %v49
  %112 = vmatprep.subr.mxu0 0.0
  %113 = vmatpush1.msra.mxu0 %v48
  %114 = vmatprep.subr.mxu0 0.0
  %115 = vmatpush2.msra.mxu0 0.0
  %116 = vmatprep.subr.mxu0 0.0
  %117 = vmatpush2.msra.mxu0 0.0
  %118 = vmatprep.subr.mxu0 0.0
  %119 = vmatpush2.msra.mxu0 0.0
  %120 = vmatprep.subr.mxu0 0.0
  %121 = vmatpush2.msra.mxu0 0.0
  %122 = vmatprep.subr.mxu0 0.0
  %123 = vmatpush2.msra.mxu0 0.0
  %124 = vmatprep.subr.mxu0 0.0
  %125 = vmatpush2.msra.mxu0 0.0
  %126 = vmatprep.subr.mxu0 0.0
  %127 = vmatpush2.msra.mxu0 0.0
  %128 = vmatprep.subr.mxu0 0.0
  %129 = vmatpush2.msra.mxu0 0.0
  %130 = vmatprep.subr.mxu0 0.0
  %131 = vmatpush2.msra.mxu0 0.0
  %132 = vmatprep.subr.mxu0 0.0
  %133 = vmatpush2.msra.mxu0 0.0
  %134 = vmatprep.subr.mxu0 0.0
  %135 = vmatpush2.msra.mxu0 0.0
  %136 = vmatprep.subr.mxu0 0.0
  %137 = vmatpush2.msra.mxu0 0.0
  %138 = vmatprep.subr.mxu0 0.0
  %139 = vmatpush2.msra.mxu0 0.0
  %140 = vmatprep.subr.mxu0 0.0
  %141 = vmatpush2.msra.mxu0 0.0
  %142 = vmatprep.subr.mxu0 0.0
  %143 = vmatpush2.msra.mxu0 0.0
  %144 = vmatprep.subr.mxu0 0.0
  %145 = vmatpush2.msra.mxu0 0.0
  %146 = vmatprep.mubr.f32.mxu0 0.0
  %147 = vmatmul.mubr.f32.gmra.mxu0 %v59
  %v148 = vpop.f32.mrf.mxu0
  %v149 = vadd.f32 %v55, %v148
  %v150 = vpop.f32.mrf.mxu0
  %151 = vmatprep.mubr.f32.mxu0 0.0
  %152 = vmatmul.mubr.f32.gmra.mxu0 %v62
  %v153 = vpop.f32.mrf.mxu0
  %v154 = vadd.f32 %v55, %v153
  %v155 = vpop.f32.mrf.mxu0
  %156 = vmatprep.mubr.f32.mxu0 0.0
  %157 = vmatmul.mubr.f32.gmra.mxu0 %v65
  %v158 = vpop.f32.mrf.mxu0
  %v159 = vadd.f32 %v55, %v158
  %v160 = vpop.f32.mrf.mxu0
  %161 = vmatprep.mubr.f32.mxu0 0.0
  %162 = vmatmul.mubr.f32.gmra.mxu0 %v68
  %v163 = vpop.f32.mrf.mxu0
  %v164 = vadd.f32 %v55, %v163
  %v165 = vpop.f32.mrf.mxu0
  %166 = vmatprep.mubr.f32.mxu0 0.0
  %167 = vmatmul.mubr.f32.gmra.mxu0 %v71
  %v168 = vpop.f32.mrf.mxu0
  %v169 = vadd.f32 %v55, %v168
  %v170 = vpop.f32.mrf.mxu0
  %171 = vmatprep.mubr.f32.mxu0 0.0
  %172 = vmatmul.mubr.f32.gmra.mxu0 %v74
  %v173 = vpop.f32.mrf.mxu0
  %v174 = vadd.f32 %v55, %v173
  %v175 = vpop.f32.mrf.mxu0
  %176 = vmatprep.mubr.f32.mxu0 0.0
  %177 = vmatmul.mubr.f32.gmra.mxu0 %v77
  %v178 = vpop.f32.mrf.mxu0
  %v179 = vadd.f32 %v55, %v178
  %v180 = vpop.f32.mrf.mxu0
  %181 = vmatprep.mubr.f32.mxu0 0.0
  %182 = vmatmul.mubr.f32.gmra.mxu0 %v80
  %v183 = vpop.f32.mrf.mxu0
  %v184 = vadd.f32 %v55, %v183
  %v185 = vpop.f32.mrf.mxu0
  %186 = vdwg.mxu0
  %v187 = vld [vmem:[%s3] sm:$0xff]
  %v188 = vld [vmem:[%s3 + $0x8] sm:$0xff]
  %v189 = vld [vmem:[%s3 + $0x10] sm:$0xff]
  %v190 = vld [vmem:[%s3 + $0x18] sm:$0xff]
  %v191 = vld [vmem:[%s3 + $0x20] sm:$0xff]
  %v192 = vld [vmem:[%s3 + $0x28] sm:$0xff]
  %v193 = vld [vmem:[%s3 + $0x30] sm:$0xff]
  %v194 = vld [vmem:[%s3 + $0x38] sm:$0xff]
  %v195 = vld [vmem:[%s3 + $0x40] sm:$0xff]
  %v196 = vld [vmem:[%s3 + $0x48] sm:$0xff]
  %v197 = vld [vmem:[%s3 + $0x50] sm:$0xff]
  %v198 = vld [vmem:[%s3 + $0x58] sm:$0xff]
  %v199 = vld [vmem:[%s3 + $0x60] sm:$0xff]
  %v200 = vld [vmem:[%s3 + $0x68] sm:$0xff]
  %v201 = vld [vmem:[%s3 + $0x70] sm:$0xff]
  %v202 = vld [vmem:[%s3 + $0x78] sm:$0xff]
  %v203 = vld [vmem:[%s4] sm:$0x1]
  %vm204 = vcmask 523264
  %v206 = vsel %vm204, 0.0, 0
  %208 = vmatprep.subr.mxu0 0.0
  %209 = vmatpush1.msra.mxu0 0.0
  %210 = vmatprep.subr.mxu0 0.0
  %211 = vmatpush1.msra.mxu0 0.0
  %212 = vmatprep.subr.mxu0 0.0
  %213 = vmatpush1.msra.mxu0 0.0
  %214 = vmatprep.subr.mxu0 0.0
  %215 = vmatpush1.msra.mxu0 0.0
  %216 = vmatprep.subr.mxu0 0.0
  %217 = vmatpush1.msra.mxu0 0.0
  %218 = vmatprep.subr.mxu0 0.0
  %219 = vmatpush1.msra.mxu0 0.0
  %220 = vmatprep.subr.mxu0 0.0
  %221 = vmatpush1.msra.mxu0 0.0
  %222 = vmatprep.subr.mxu0 0.0
  %223 = vmatpush1.msra.mxu0 0.0
  %224 = vmatprep.subr.mxu0 %v202
  %225 = vmatpush1.msra.mxu0 %v201
  %226 = vmatprep.subr.mxu0 %v200
  %227 = vmatpush1.msra.mxu0 %v199
  %228 = vmatprep.subr.mxu0 %v198
  %229 = vmatpush1.msra.mxu0 %v197
  %230 = vmatprep.subr.mxu0 %v196
  %231 = vmatpush1.msra.mxu0 %v195
  %232 = vmatprep.subr.mxu0 %v194
  %233 = vmatpush1.msra.mxu0 %v193
  %234 = vmatprep.subr.mxu0 %v192
  %235 = vmatpush1.msra.mxu0 %v191
  %236 = vmatprep.subr.mxu0 %v190
  %237 = vmatpush1.msra.mxu0 %v189
  %238 = vmatprep.subr.mxu0 %v188
  %239 = vmatpush1.msra.mxu0 %v187
  %240 = vmatprep.subr.mxu0 0.0
  %241 = vmatpush2.msra.mxu0 0.0
  %242 = vmatprep.subr.mxu0 0.0
  %243 = vmatpush2.msra.mxu0 0.0
  %244 = vmatprep.subr.mxu0 0.0
  %245 = vmatpush2.msra.mxu0 0.0
  %246 = vmatprep.subr.mxu0 0.0
  %247 = vmatpush2.msra.mxu0 0.0
  %248 = vmatprep.subr.mxu0 0.0
  %249 = vmatpush2.msra.mxu0 0.0
  %250 = vmatprep.subr.mxu0 0.0
  %251 = vmatpush2.msra.mxu0 0.0
  %252 = vmatprep.subr.mxu0 0.0
  %253 = vmatpush2.msra.mxu0 0.0
  %254 = vmatprep.subr.mxu0 0.0
  %255 = vmatpush2.msra.mxu0 0.0
  %256 = vmatprep.subr.mxu0 0.0
  %257 = vmatpush2.msra.mxu0 0.0
  %258 = vmatprep.subr.mxu0 0.0
  %259 = vmatpush2.msra.mxu0 0.0
  %260 = vmatprep.subr.mxu0 0.0
  %261 = vmatpush2.msra.mxu0 0.0
  %262 = vmatprep.subr.mxu0 0.0
  %263 = vmatpush2.msra.mxu0 0.0
  %264 = vmatprep.subr.mxu0 0.0
  %265 = vmatpush2.msra.mxu0 0.0
  %266 = vmatprep.subr.mxu0 0.0
  %267 = vmatpush2.msra.mxu0 0.0
  %268 = vmatprep.subr.mxu0 0.0
  %269 = vmatpush2.msra.mxu0 0.0
  %270 = vmatprep.subr.mxu0 0.0
  %271 = vmatpush2.msra.mxu0 0.0
  %272 = vmatprep.mubr.f32.mxu0 0.0
  %273 = vmatmul.mubr.f32.gmra.mxu0 %v206
  %v274 = vpop.f32.mrf.mxu0
  %v275 = vadd.f32 0.0, %v274
  %v276 = vpop.f32.mrf.mxu0
  %277 = vdwg.mxu0
  %v278 = vadd.f32 %v275, %v149
  %v279 = vxor.u32 %v278, 2147483648
  %v280 = vmul.f32 %v279, 1.442695
  %v281 = vpow.pop %v280
  %v282 = vadd.f32 %v281, 1.0
  %v283 = vrcp.pop %v282
  %v284 = vmul.f32 1.0, %v283
  %v285 = vtanh.pop %v278
  %v286 = vmul.f32 %v284, 0.0
  %288 = vrot.lane.b32.xlu0 %v285, 64
  %v289 = vpop.permute.xlu0 %288
  %v291 = vmul.f32 %v284, %v289
  %293 = vrot.lane.b32.xlu0 %v291, 32
  %v294 = vpop.permute.xlu0 %293
  %v296 = vadd.f32 %v286, %v294
  %v297 = vtanh.pop %v296
  %299 = vrot.lane.b32.xlu0 %v297, 64
  %v300 = vpop.permute.xlu0 %299
  %v302 = vmul.f32 %v284, %v300
  %304 = vrot.lane.b32.xlu0 %v302, 32
  %v305 = vpop.permute.xlu0 %304
  %vm307 = vcmask 261120
  %v308 = vsel %vm307, %v305, 0.0
  %v310 = vsel %vm204, %v308, 0
  %312 = vmatprep.subr.mxu0 0.0
  %313 = vmatpush1.msra.mxu0 0.0
  %314 = vmatprep.subr.mxu0 0.0
  %315 = vmatpush1.msra.mxu0 0.0
  %316 = vmatprep.subr.mxu0 0.0
  %317 = vmatpush1.msra.mxu0 0.0
  %318 = vmatprep.subr.mxu0 0.0
  %319 = vmatpush1.msra.mxu0 0.0
  %320 = vmatprep.subr.mxu0 0.0
  %321 = vmatpush1.msra.mxu0 0.0
  %322 = vmatprep.subr.mxu0 0.0
  %323 = vmatpush1.msra.mxu0 0.0
  %324 = vmatprep.subr.mxu0 0.0
  %325 = vmatpush1.msra.mxu0 0.0
  %326 = vmatprep.subr.mxu0 0.0
  %327 = vmatpush1.msra.mxu0 0.0
  %328 = vmatprep.subr.mxu0 %v202
  %329 = vmatpush1.msra.mxu0 %v201
  %330 = vmatprep.subr.mxu0 %v200
  %331 = vmatpush1.msra.mxu0 %v199
  %332 = vmatprep.subr.mxu0 %v198
  %333 = vmatpush1.msra.mxu0 %v197
  %334 = vmatprep.subr.mxu0 %v196
  %335 = vmatpush1.msra.mxu0 %v195
  %336 = vmatprep.subr.mxu0 %v194
  %337 = vmatpush1.msra.mxu0 %v193
  %338 = vmatprep.subr.mxu0 %v192
  %339 = vmatpush1.msra.mxu0 %v191
  %340 = vmatprep.subr.mxu0 %v190
  %341 = vmatpush1.msra.mxu0 %v189
  %342 = vmatprep.subr.mxu0 %v188
  %343 = vmatpush1.msra.mxu0 %v187
  %344 = vmatprep.subr.mxu0 0.0
  %345 = vmatpush2.msra.mxu0 0.0
  %346 = vmatprep.subr.mxu0 0.0
  %347 = vmatpush2.msra.mxu0 0.0
  %348 = vmatprep.subr.mxu0 0.0
  %349 = vmatpush2.msra.mxu0 0.0
  %350 = vmatprep.subr.mxu0 0.0
  %351 = vmatpush2.msra.mxu0 0.0
  %352 = vmatprep.subr.mxu0 0.0
  %353 = vmatpush2.msra.mxu0 0.0
  %354 = vmatprep.subr.mxu0 0.0
  %355 = vmatpush2.msra.mxu0 0.0
  %356 = vmatprep.subr.mxu0 0.0
  %357 = vmatpush2.msra.mxu0 0.0
  %358 = vmatprep.subr.mxu0 0.0
  %359 = vmatpush2.msra.mxu0 0.0
  %360 = vmatprep.subr.mxu0 0.0
  %361 = vmatpush2.msra.mxu0 0.0
  %362 = vmatprep.subr.mxu0 0.0
  %363 = vmatpush2.msra.mxu0 0.0
  %364 = vmatprep.subr.mxu0 0.0
  %365 = vmatpush2.msra.mxu0 0.0
  %366 = vmatprep.subr.mxu0 0.0
  %367 = vmatpush2.msra.mxu0 0.0
  %368 = vmatprep.subr.mxu0 0.0
  %369 = vmatpush2.msra.mxu0 0.0
  %370 = vmatprep.subr.mxu0 0.0
  %371 = vmatpush2.msra.mxu0 0.0
  %372 = vmatprep.subr.mxu0 0.0
  %373 = vmatpush2.msra.mxu0 0.0
  %374 = vmatprep.subr.mxu0 0.0
  %375 = vmatpush2.msra.mxu0 0.0
  %376 = vmatprep.mubr.f32.mxu0 0.0
  %377 = vmatmul.mubr.f32.gmra.mxu0 %v310
  %v378 = vpop.f32.mrf.mxu0
  %v379 = vadd.f32 0.0, %v378
  %v380 = vpop.f32.mrf.mxu0
  %v381 = vadd.f32 0.0, %v380
  %382 = vdwg.mxu0
  %v383 = vadd.f32 %v379, %v154
  %v384 = vxor.u32 %v383, 2147483648
  %v385 = vmul.f32 %v384, 1.442695
  %v386 = vpow.pop %v385
  %v387 = vadd.f32 %v386, 1.0
  %v388 = vrcp.pop %v387
  %v389 = vmul.f32 1.0, %v388
  %v390 = vtanh.pop %v383
  %v391 = vmul.f32 %v389, %v296
  %393 = vrot.lane.b32.xlu0 %v390, 64
  %v394 = vpop.permute.xlu0 %393
  %v396 = vmul.f32 %v389, %v394
  %398 = vrot.lane.b32.xlu0 %v396, 32
  %v399 = vpop.permute.xlu0 %398
  %v401 = vadd.f32 %v391, %v399
  %v402 = vtanh.pop %v401
  %404 = vrot.lane.b32.xlu0 %v402, 64
  %v405 = vpop.permute.xlu0 %404
  %v407 = vmul.f32 %v389, %v405
  %v409 = vlaneseq
  %v410 = vshrl.u32 %v409, 7
  %v411 = vsub.s32 0, %v410
  %v412 = vrot.slane %v203, %v411
  %v414 = vadd.f32 %v381, %v412
  %v415 = vxor.u32 %v414, 2147483648
  %v416 = vmul.f32 %v415, 1.442695
  %v417 = vpow.pop %v416
  %v418 = vadd.f32 %v417, 1.0
  %v419 = vrcp.pop %v418
  %v420 = vmul.f32 1.0, %v419
  %v421 = vtanh.pop %v414
  %v422 = vmul.f32 %v420, 0.0
  %424 = vrot.lane.b32.xlu0 %v421, 64
  %v425 = vpop.permute.xlu0 %424
  %v427 = vmul.f32 %v420, %v425
  %429 = vrot.lane.b32.xlu0 %v427, 32
  %v430 = vpop.permute.xlu0 %429
  %v432 = vadd.f32 %v422, %v430
  %v433 = vtanh.pop %v432
  %435 = vrot.lane.b32.xlu0 %v433, 64
  %v436 = vpop.permute.xlu0 %435
  %v438 = vmul.f32 %v420, %v436
  %440 = vrot.lane.b32.xlu0 %v407, 32
  %v441 = vpop.permute.xlu0 %440
  %444 = vrot.lane.b32.xlu0 %v438, 64
  %v445 = vpop.permute.xlu0 %444
  %v447 = vsel %vm307, %v441, %v445
  %v449 = vsel %vm204, %v447, 0
  %451 = vmatprep.subr.mxu0 0.0
  %452 = vmatpush1.msra.mxu0 0.0
  %453 = vmatprep.subr.mxu0 0.0
  %454 = vmatpush1.msra.mxu0 0.0
  %455 = vmatprep.subr.mxu0 0.0
  %456 = vmatpush1.msra.mxu0 0.0
  %457 = vmatprep.subr.mxu0 0.0
  %458 = vmatpush1.msra.mxu0 0.0
  %459 = vmatprep.subr.mxu0 0.0
  %460 = vmatpush1.msra.mxu0 0.0
  %461 = vmatprep.subr.mxu0 0.0
  %462 = vmatpush1.msra.mxu0 0.0
  %463 = vmatprep.subr.mxu0 0.0
  %464 = vmatpush1.msra.mxu0 0.0
  %465 = vmatprep.subr.mxu0 0.0
  %466 = vmatpush1.msra.mxu0 0.0
  %467 = vmatprep.subr.mxu0 %v202
  %468 = vmatpush1.msra.mxu0 %v201
  %469 = vmatprep.subr.mxu0 %v200
  %470 = vmatpush1.msra.mxu0 %v199
  %471 = vmatprep.subr.mxu0 %v198
  %472 = vmatpush1.msra.mxu0 %v197
  %473 = vmatprep.subr.mxu0 %v196
  %474 = vmatpush1.msra.mxu0 %v195
  %475 = vmatprep.subr.mxu0 %v194
  %476 = vmatpush1.msra.mxu0 %v193
  %477 = vmatprep.subr.mxu0 %v192
  %478 = vmatpush1.msra.mxu0 %v191
  %479 = vmatprep.subr.mxu0 %v190
  %480 = vmatpush1.msra.mxu0 %v189
  %481 = vmatprep.subr.mxu0 %v188
  %482 = vmatpush1.msra.mxu0 %v187
  %483 = vmatprep.subr.mxu0 0.0
  %484 = vmatpush2.msra.mxu0 0.0
  %485 = vmatprep.subr.mxu0 0.0
  %486 = vmatpush2.msra.mxu0 0.0
  %487 = vmatprep.subr.mxu0 0.0
  %488 = vmatpush2.msra.mxu0 0.0
  %489 = vmatprep.subr.mxu0 0.0
  %490 = vmatpush2.msra.mxu0 0.0
  %491 = vmatprep.subr.mxu0 0.0
  %492 = vmatpush2.msra.mxu0 0.0
  %493 = vmatprep.subr.mxu0 0.0
  %494 = vmatpush2.msra.mxu0 0.0
  %495 = vmatprep.subr.mxu0 0.0
  %496 = vmatpush2.msra.mxu0 0.0
  %497 = vmatprep.subr.mxu0 0.0
  %498 = vmatpush2.msra.mxu0 0.0
  %499 = vmatprep.subr.mxu0 0.0
  %500 = vmatpush2.msra.mxu0 0.0
  %501 = vmatprep.subr.mxu0 0.0
  %502 = vmatpush2.msra.mxu0 0.0
  %503 = vmatprep.subr.mxu0 0.0
  %504 = vmatpush2.msra.mxu0 0.0
  %505 = vmatprep.subr.mxu0 0.0
  %506 = vmatpush2.msra.mxu0 0.0
  %507 = vmatprep.subr.mxu0 0.0
  %508 = vmatpush2.msra.mxu0 0.0
  %509 = vmatprep.subr.mxu0 0.0
  %510 = vmatpush2.msra.mxu0 0.0
  %511 = vmatprep.subr.mxu0 0.0
  %512 = vmatpush2.msra.mxu0 0.0
  %513 = vmatprep.subr.mxu0 0.0
  %514 = vmatpush2.msra.mxu0 0.0
  %515 = vmatprep.mubr.f32.mxu0 0.0
  %516 = vmatmul.mubr.f32.gmra.mxu0 %v449
  %v517 = vpop.f32.mrf.mxu0
  %v518 = vadd.f32 0.0, %v517
  %v519 = vpop.f32.mrf.mxu0
  %v520 = vadd.f32 0.0, %v519
  %521 = vdwg.mxu0
  %v522 = vadd.f32 %v518, %v159
  %v523 = vxor.u32 %v522, 2147483648
  %v524 = vmul.f32 %v523, 1.442695
  %v525 = vpow.pop %v524
  %v526 = vadd.f32 %v525, 1.0
  %v527 = vrcp.pop %v526
  %v528 = vmul.f32 1.0, %v527
  %v529 = vtanh.pop %v522
  %v530 = vmul.f32 %v528, %v401
  %532 = vrot.lane.b32.xlu0 %v529, 64
  %v533 = vpop.permute.xlu0 %532
  %v535 = vmul.f32 %v528, %v533
  %537 = vrot.lane.b32.xlu0 %v535, 32
  %v538 = vpop.permute.xlu0 %537
  %v540 = vadd.f32 %v530, %v538
  %v541 = vtanh.pop %v540
  %543 = vrot.lane.b32.xlu0 %v541, 64
  %v544 = vpop.permute.xlu0 %543
  %v546 = vmul.f32 %v528, %v544
  %v547 = vadd.f32 %v520, %v412
  %v548 = vxor.u32 %v547, 2147483648
  %v549 = vmul.f32 %v548, 1.442695
  %v550 = vpow.pop %v549
  %v551 = vadd.f32 %v550, 1.0
  %v552 = vrcp.pop %v551
  %v553 = vmul.f32 1.0, %v552
  %v554 = vtanh.pop %v547
  %v555 = vmul.f32 %v553, %v432
  %557 = vrot.lane.b32.xlu0 %v554, 64
  %v558 = vpop.permute.xlu0 %557
  %v560 = vmul.f32 %v553, %v558
  %562 = vrot.lane.b32.xlu0 %v560, 32
  %v563 = vpop.permute.xlu0 %562
  %v565 = vadd.f32 %v555, %v563
  %v566 = vtanh.pop %v565
  %568 = vrot.lane.b32.xlu0 %v566, 64
  %v569 = vpop.permute.xlu0 %568
  %v571 = vmul.f32 %v553, %v569
  %573 = vrot.lane.b32.xlu0 %v546, 32
  %v574 = vpop.permute.xlu0 %573
  %577 = vrot.lane.b32.xlu0 %v571, 64
  %v578 = vpop.permute.xlu0 %577
  %v580 = vsel %vm307, %v574, %v578
  %v582 = vsel %vm204, %v580, 0
  %584 = vmatprep.subr.mxu0 0.0
  %585 = vmatpush1.msra.mxu0 0.0
  %586 = vmatprep.subr.mxu0 0.0
  %587 = vmatpush1.msra.mxu0 0.0
  %588 = vmatprep.subr.mxu0 0.0
  %589 = vmatpush1.msra.mxu0 0.0
  %590 = vmatprep.subr.mxu0 0.0
  %591 = vmatpush1.msra.mxu0 0.0
  %592 = vmatprep.subr.mxu0 0.0
  %593 = vmatpush1.msra.mxu0 0.0
  %594 = vmatprep.subr.mxu0 0.0
  %595 = vmatpush1.msra.mxu0 0.0
  %596 = vmatprep.subr.mxu0 0.0
  %597 = vmatpush1.msra.mxu0 0.0
  %598 = vmatprep.subr.mxu0 0.0
  %599 = vmatpush1.msra.mxu0 0.0
  %600 = vmatprep.subr.mxu0 %v202
  %601 = vmatpush1.msra.mxu0 %v201
  %602 = vmatprep.subr.mxu0 %v200
  %603 = vmatpush1.msra.mxu0 %v199
  %604 = vmatprep.subr.mxu0 %v198
  %605 = vmatpush1.msra.mxu0 %v197
  %606 = vmatprep.subr.mxu0 %v196
  %607 = vmatpush1.msra.mxu0 %v195
  %608 = vmatprep.subr.mxu0 %v194
  %609 = vmatpush1.msra.mxu0 %v193
  %610 = vmatprep.subr.mxu0 %v192
  %611 = vmatpush1.msra.mxu0 %v191
  %612 = vmatprep.subr.mxu0 %v190
  %613 = vmatpush1.msra.mxu0 %v189
  %614 = vmatprep.subr.mxu0 %v188
  %615 = vmatpush1.msra.mxu0 %v187
  %616 = vmatprep.subr.mxu0 0.0
  %617 = vmatpush2.msra.mxu0 0.0
  %618 = vmatprep.subr.mxu0 0.0
  %619 = vmatpush2.msra.mxu0 0.0
  %620 = vmatprep.subr.mxu0 0.0
  %621 = vmatpush2.msra.mxu0 0.0
  %622 = vmatprep.subr.mxu0 0.0
  %623 = vmatpush2.msra.mxu0 0.0
  %624 = vmatprep.subr.mxu0 0.0
  %625 = vmatpush2.msra.mxu0 0.0
  %626 = vmatprep.subr.mxu0 0.0
  %627 = vmatpush2.msra.mxu0 0.0
  %628 = vmatprep.subr.mxu0 0.0
  %629 = vmatpush2.msra.mxu0 0.0
  %630 = vmatprep.subr.mxu0 0.0
  %631 = vmatpush2.msra.mxu0 0.0
  %632 = vmatprep.subr.mxu0 0.0
  %633 = vmatpush2.msra.mxu0 0.0
  %634 = vmatprep.subr.mxu0 0.0
  %635 = vmatpush2.msra.mxu0 0.0
  %636 = vmatprep.subr.mxu0 0.0
  %637 = vmatpush2.msra.mxu0 0.0
  %638 = vmatprep.subr.mxu0 0.0
  %639 = vmatpush2.msra.mxu0 0.0
  %640 = vmatprep.subr.mxu0 0.0
  %641 = vmatpush2.msra.mxu0 0.0
  %642 = vmatprep.subr.mxu0 0.0
  %643 = vmatpush2.msra.mxu0 0.0
  %644 = vmatprep.subr.mxu0 0.0
  %645 = vmatpush2.msra.mxu0 0.0
  %646 = vmatprep.subr.mxu0 0.0
  %647 = vmatpush2.msra.mxu0 0.0
  %648 = vmatprep.mubr.f32.mxu0 0.0
  %649 = vmatmul.mubr.f32.gmra.mxu0 %v582
  %v650 = vpop.f32.mrf.mxu0
  %v651 = vadd.f32 0.0, %v650
  %v652 = vpop.f32.mrf.mxu0
  %v653 = vadd.f32 0.0, %v652
  %654 = vdwg.mxu0
  %v655 = vadd.f32 %v651, %v164
  %v656 = vxor.u32 %v655, 2147483648
  %v657 = vmul.f32 %v656, 1.442695
  %v658 = vpow.pop %v657
  %v659 = vadd.f32 %v658, 1.0
  %v660 = vrcp.pop %v659
  %v661 = vmul.f32 1.0, %v660
  %v662 = vtanh.pop %v655
  %v663 = vmul.f32 %v661, %v540
  %665 = vrot.lane.b32.xlu0 %v662, 64
  %v666 = vpop.permute.xlu0 %665
  %v668 = vmul.f32 %v661, %v666
  %670 = vrot.lane.b32.xlu0 %v668, 32
  %v671 = vpop.permute.xlu0 %670
  %v673 = vadd.f32 %v663, %v671
  %v674 = vtanh.pop %v673
  %676 = vrot.lane.b32.xlu0 %v674, 64
  %v677 = vpop.permute.xlu0 %676
  %v679 = vmul.f32 %v661, %v677
  %v680 = vadd.f32 %v653, %v412
  %v681 = vxor.u32 %v680, 2147483648
  %v682 = vmul.f32 %v681, 1.442695
  %v683 = vpow.pop %v682
  %v684 = vadd.f32 %v683, 1.0
  %v685 = vrcp.pop %v684
  %v686 = vmul.f32 1.0, %v685
  %v687 = vtanh.pop %v680
  %v688 = vmul.f32 %v686, %v565
  %690 = vrot.lane.b32.xlu0 %v687, 64
  %v691 = vpop.permute.xlu0 %690
  %v693 = vmul.f32 %v686, %v691
  %695 = vrot.lane.b32.xlu0 %v693, 32
  %v696 = vpop.permute.xlu0 %695
  %v698 = vadd.f32 %v688, %v696
  %v699 = vtanh.pop %v698
  %701 = vrot.lane.b32.xlu0 %v699, 64
  %v702 = vpop.permute.xlu0 %701
  %v704 = vmul.f32 %v686, %v702
  %706 = vrot.lane.b32.xlu0 %v679, 32
  %v707 = vpop.permute.xlu0 %706
  %710 = vrot.lane.b32.xlu0 %v704, 64
  %v711 = vpop.permute.xlu0 %710
  %v713 = vsel %vm307, %v707, %v711
  %v715 = vsel %vm204, %v713, 0
  %717 = vmatprep.subr.mxu0 0.0
  %718 = vmatpush1.msra.mxu0 0.0
  %719 = vmatprep.subr.mxu0 0.0
  %720 = vmatpush1.msra.mxu0 0.0
  %721 = vmatprep.subr.mxu0 0.0
  %722 = vmatpush1.msra.mxu0 0.0
  %723 = vmatprep.subr.mxu0 0.0
  %724 = vmatpush1.msra.mxu0 0.0
  %725 = vmatprep.subr.mxu0 0.0
  %726 = vmatpush1.msra.mxu0 0.0
  %727 = vmatprep.subr.mxu0 0.0
  %728 = vmatpush1.msra.mxu0 0.0
  %729 = vmatprep.subr.mxu0 0.0
  %730 = vmatpush1.msra.mxu0 0.0
  %731 = vmatprep.subr.mxu0 0.0
  %732 = vmatpush1.msra.mxu0 0.0
  %733 = vmatprep.subr.mxu0 %v202
  %734 = vmatpush1.msra.mxu0 %v201
  %735 = vmatprep.subr.mxu0 %v200
  %736 = vmatpush1.msra.mxu0 %v199
  %737 = vmatprep.subr.mxu0 %v198
  %738 = vmatpush1.msra.mxu0 %v197
  %739 = vmatprep.subr.mxu0 %v196
  %740 = vmatpush1.msra.mxu0 %v195
  %741 = vmatprep.subr.mxu0 %v194
  %742 = vmatpush1.msra.mxu0 %v193
  %743 = vmatprep.subr.mxu0 %v192
  %744 = vmatpush1.msra.mxu0 %v191
  %745 = vmatprep.subr.mxu0 %v190
  %746 = vmatpush1.msra.mxu0 %v189
  %747 = vmatprep.subr.mxu0 %v188
  %748 = vmatpush1.msra.mxu0 %v187
  %749 = vmatprep.subr.mxu0 0.0
  %750 = vmatpush2.msra.mxu0 0.0
  %751 = vmatprep.subr.mxu0 0.0
  %752 = vmatpush2.msra.mxu0 0.0
  %753 = vmatprep.subr.mxu0 0.0
  %754 = vmatpush2.msra.mxu0 0.0
  %755 = vmatprep.subr.mxu0 0.0
  %756 = vmatpush2.msra.mxu0 0.0
  %757 = vmatprep.subr.mxu0 0.0
  %758 = vmatpush2.msra.mxu0 0.0
  %759 = vmatprep.subr.mxu0 0.0
  %760 = vmatpush2.msra.mxu0 0.0
  %761 = vmatprep.subr.mxu0 0.0
  %762 = vmatpush2.msra.mxu0 0.0
  %763 = vmatprep.subr.mxu0 0.0
  %764 = vmatpush2.msra.mxu0 0.0
  %765 = vmatprep.subr.mxu0 0.0
  %766 = vmatpush2.msra.mxu0 0.0
  %767 = vmatprep.subr.mxu0 0.0
  %768 = vmatpush2.msra.mxu0 0.0
  %769 = vmatprep.subr.mxu0 0.0
  %770 = vmatpush2.msra.mxu0 0.0
  %771 = vmatprep.subr.mxu0 0.0
  %772 = vmatpush2.msra.mxu0 0.0
  %773 = vmatprep.subr.mxu0 0.0
  %774 = vmatpush2.msra.mxu0 0.0
  %775 = vmatprep.subr.mxu0 0.0
  %776 = vmatpush2.msra.mxu0 0.0
  %777 = vmatprep.subr.mxu0 0.0
  %778 = vmatpush2.msra.mxu0 0.0
  %779 = vmatprep.subr.mxu0 0.0
  %780 = vmatpush2.msra.mxu0 0.0
  %781 = vmatprep.mubr.f32.mxu0 0.0
  %782 = vmatmul.mubr.f32.gmra.mxu0 %v715
  %v783 = vpop.f32.mrf.mxu0
  %v784 = vadd.f32 0.0, %v783
  %v785 = vpop.f32.mrf.mxu0
  %v786 = vadd.f32 0.0, %v785
  %787 = vdwg.mxu0
  %v788 = vadd.f32 %v784, %v169
  %v789 = vxor.u32 %v788, 2147483648
  %v790 = vmul.f32 %v789, 1.442695
  %v791 = vpow.pop %v790
  %v792 = vadd.f32 %v791, 1.0
  %v793 = vrcp.pop %v792
  %v794 = vmul.f32 1.0, %v793
  %v795 = vtanh.pop %v788
  %v796 = vmul.f32 %v794, %v673
  %798 = vrot.lane.b32.xlu0 %v795, 64
  %v799 = vpop.permute.xlu0 %798
  %v801 = vmul.f32 %v794, %v799
  %803 = vrot.lane.b32.xlu0 %v801, 32
  %v804 = vpop.permute.xlu0 %803
  %v806 = vadd.f32 %v796, %v804
  %v807 = vtanh.pop %v806
  %809 = vrot.lane.b32.xlu0 %v807, 64
  %v810 = vpop.permute.xlu0 %809
  %v812 = vmul.f32 %v794, %v810
  %v813 = vadd.f32 %v786, %v412
  %v814 = vxor.u32 %v813, 2147483648
  %v815 = vmul.f32 %v814, 1.442695
  %v816 = vpow.pop %v815
  %v817 = vadd.f32 %v816, 1.0
  %v818 = vrcp.pop %v817
  %v819 = vmul.f32 1.0, %v818
  %v820 = vtanh.pop %v813
  %v821 = vmul.f32 %v819, %v698
  %823 = vrot.lane.b32.xlu0 %v820, 64
  %v824 = vpop.permute.xlu0 %823
  %v826 = vmul.f32 %v819, %v824
  %828 = vrot.lane.b32.xlu0 %v826, 32
  %v829 = vpop.permute.xlu0 %828
  %v831 = vadd.f32 %v821, %v829
  %v832 = vtanh.pop %v831
  %834 = vrot.lane.b32.xlu0 %v832, 64
  %v835 = vpop.permute.xlu0 %834
  %v837 = vmul.f32 %v819, %v835
  %839 = vrot.lane.b32.xlu0 %v812, 32
  %v840 = vpop.permute.xlu0 %839
  %843 = vrot.lane.b32.xlu0 %v837, 64
  %v844 = vpop.permute.xlu0 %843
  %v846 = vsel %vm307, %v840, %v844
  %v848 = vsel %vm204, %v846, 0
  %850 = vmatprep.subr.mxu0 0.0
  %851 = vmatpush1.msra.mxu0 0.0
  %852 = vmatprep.subr.mxu0 0.0
  %853 = vmatpush1.msra.mxu0 0.0
  %854 = vmatprep.subr.mxu0 0.0
  %855 = vmatpush1.msra.mxu0 0.0
  %856 = vmatprep.subr.mxu0 0.0
  %857 = vmatpush1.msra.mxu0 0.0
  %858 = vmatprep.subr.mxu0 0.0
  %859 = vmatpush1.msra.mxu0 0.0
  %860 = vmatprep.subr.mxu0 0.0
  %861 = vmatpush1.msra.mxu0 0.0
  %862 = vmatprep.subr.mxu0 0.0
  %863 = vmatpush1.msra.mxu0 0.0
  %864 = vmatprep.subr.mxu0 0.0
  %865 = vmatpush1.msra.mxu0 0.0
  %866 = vmatprep.subr.mxu0 %v202
  %867 = vmatpush1.msra.mxu0 %v201
  %868 = vmatprep.subr.mxu0 %v200
  %869 = vmatpush1.msra.mxu0 %v199
  %870 = vmatprep.subr.mxu0 %v198
  %871 = vmatpush1.msra.mxu0 %v197
  %872 = vmatprep.subr.mxu0 %v196
  %873 = vmatpush1.msra.mxu0 %v195
  %874 = vmatprep.subr.mxu0 %v194
  %875 = vmatpush1.msra.mxu0 %v193
  %876 = vmatprep.subr.mxu0 %v192
  %877 = vmatpush1.msra.mxu0 %v191
  %878 = vmatprep.subr.mxu0 %v190
  %879 = vmatpush1.msra.mxu0 %v189
  %880 = vmatprep.subr.mxu0 %v188
  %881 = vmatpush1.msra.mxu0 %v187
  %882 = vmatprep.subr.mxu0 0.0
  %883 = vmatpush2.msra.mxu0 0.0
  %884 = vmatprep.subr.mxu0 0.0
  %885 = vmatpush2.msra.mxu0 0.0
  %886 = vmatprep.subr.mxu0 0.0
  %887 = vmatpush2.msra.mxu0 0.0
  %888 = vmatprep.subr.mxu0 0.0
  %889 = vmatpush2.msra.mxu0 0.0
  %890 = vmatprep.subr.mxu0 0.0
  %891 = vmatpush2.msra.mxu0 0.0
  %892 = vmatprep.subr.mxu0 0.0
  %893 = vmatpush2.msra.mxu0 0.0
  %894 = vmatprep.subr.mxu0 0.0
  %895 = vmatpush2.msra.mxu0 0.0
  %896 = vmatprep.subr.mxu0 0.0
  %897 = vmatpush2.msra.mxu0 0.0
  %898 = vmatprep.subr.mxu0 0.0
  %899 = vmatpush2.msra.mxu0 0.0
  %900 = vmatprep.subr.mxu0 0.0
  %901 = vmatpush2.msra.mxu0 0.0
  %902 = vmatprep.subr.mxu0 0.0
  %903 = vmatpush2.msra.mxu0 0.0
  %904 = vmatprep.subr.mxu0 0.0
  %905 = vmatpush2.msra.mxu0 0.0
  %906 = vmatprep.subr.mxu0 0.0
  %907 = vmatpush2.msra.mxu0 0.0
  %908 = vmatprep.subr.mxu0 0.0
  %909 = vmatpush2.msra.mxu0 0.0
  %910 = vmatprep.subr.mxu0 0.0
  %911 = vmatpush2.msra.mxu0 0.0
  %912 = vmatprep.subr.mxu0 0.0
  %913 = vmatpush2.msra.mxu0 0.0
  %914 = vmatprep.mubr.f32.mxu0 0.0
  %915 = vmatmul.mubr.f32.gmra.mxu0 %v848
  %v916 = vpop.f32.mrf.mxu0
  %v917 = vadd.f32 0.0, %v916
  %v918 = vpop.f32.mrf.mxu0
  %v919 = vadd.f32 0.0, %v918
  %920 = vdwg.mxu0
  %v921 = vadd.f32 %v917, %v174
  %v922 = vxor.u32 %v921, 2147483648
  %v923 = vmul.f32 %v922, 1.442695
  %v924 = vpow.pop %v923
  %v925 = vadd.f32 %v924, 1.0
  %v926 = vrcp.pop %v925
  %v927 = vmul.f32 1.0, %v926
  %v928 = vtanh.pop %v921
  %v929 = vmul.f32 %v927, %v806
  %931 = vrot.lane.b32.xlu0 %v928, 64
  %v932 = vpop.permute.xlu0 %931
  %v934 = vmul.f32 %v927, %v932
  %936 = vrot.lane.b32.xlu0 %v934, 32
  %v937 = vpop.permute.xlu0 %936
  %v939 = vadd.f32 %v929, %v937
  %v940 = vtanh.pop %v939
  %942 = vrot.lane.b32.xlu0 %v940, 64
  %v943 = vpop.permute.xlu0 %942
  %v945 = vmul.f32 %v927, %v943
  %v946 = vadd.f32 %v919, %v412
  %v947 = vxor.u32 %v946, 2147483648
  %v948 = vmul.f32 %v947, 1.442695
  %v949 = vpow.pop %v948
  %v950 = vadd.f32 %v949, 1.0
  %v951 = vrcp.pop %v950
  %v952 = vmul.f32 1.0, %v951
  %v953 = vtanh.pop %v946
  %v954 = vmul.f32 %v952, %v831
  %956 = vrot.lane.b32.xlu0 %v953, 64
  %v957 = vpop.permute.xlu0 %956
  %v959 = vmul.f32 %v952, %v957
  %961 = vrot.lane.b32.xlu0 %v959, 32
  %v962 = vpop.permute.xlu0 %961
  %v964 = vadd.f32 %v954, %v962
  %v965 = vtanh.pop %v964
  %967 = vrot.lane.b32.xlu0 %v965, 64
  %v968 = vpop.permute.xlu0 %967
  %v970 = vmul.f32 %v952, %v968
  %972 = vrot.lane.b32.xlu0 %v945, 32
  %v973 = vpop.permute.xlu0 %972
  %976 = vrot.lane.b32.xlu0 %v970, 64
  %v977 = vpop.permute.xlu0 %976
  %v979 = vsel %vm307, %v973, %v977
  %v981 = vsel %vm204, %v979, 0
  %983 = vmatprep.subr.mxu0 0.0
  %984 = vmatpush1.msra.mxu0 0.0
  %985 = vmatprep.subr.mxu0 0.0
  %986 = vmatpush1.msra.mxu0 0.0
  %987 = vmatprep.subr.mxu0 0.0
  %988 = vmatpush1.msra.mxu0 0.0
  %989 = vmatprep.subr.mxu0 0.0
  %990 = vmatpush1.msra.mxu0 0.0
  %991 = vmatprep.subr.mxu0 0.0
  %992 = vmatpush1.msra.mxu0 0.0
  %993 = vmatprep.subr.mxu0 0.0
  %994 = vmatpush1.msra.mxu0 0.0
  %995 = vmatprep.subr.mxu0 0.0
  %996 = vmatpush1.msra.mxu0 0.0
  %997 = vmatprep.subr.mxu0 0.0
  %998 = vmatpush1.msra.mxu0 0.0
  %999 = vmatprep.subr.mxu0 %v202
  %1000 = vmatpush1.msra.mxu0 %v201
  %1001 = vmatprep.subr.mxu0 %v200
  %1002 = vmatpush1.msra.mxu0 %v199
  %1003 = vmatprep.subr.mxu0 %v198
  %1004 = vmatpush1.msra.mxu0 %v197
  %1005 = vmatprep.subr.mxu0 %v196
  %1006 = vmatpush1.msra.mxu0 %v195
  %1007 = vmatprep.subr.mxu0 %v194
  %1008 = vmatpush1.msra.mxu0 %v193
  %1009 = vmatprep.subr.mxu0 %v192
  %1010 = vmatpush1.msra.mxu0 %v191
  %1011 = vmatprep.subr.mxu0 %v190
  %1012 = vmatpush1.msra.mxu0 %v189
  %1013 = vmatprep.subr.mxu0 %v188
  %1014 = vmatpush1.msra.mxu0 %v187
  %1015 = vmatprep.subr.mxu0 0.0
  %1016 = vmatpush2.msra.mxu0 0.0
  %1017 = vmatprep.subr.mxu0 0.0
  %1018 = vmatpush2.msra.mxu0 0.0
  %1019 = vmatprep.subr.mxu0 0.0
  %1020 = vmatpush2.msra.mxu0 0.0
  %1021 = vmatprep.subr.mxu0 0.0
  %1022 = vmatpush2.msra.mxu0 0.0
  %1023 = vmatprep.subr.mxu0 0.0
  %1024 = vmatpush2.msra.mxu0 0.0
  %1025 = vmatprep.subr.mxu0 0.0
  %1026 = vmatpush2.msra.mxu0 0.0
  %1027 = vmatprep.subr.mxu0 0.0
  %1028 = vmatpush2.msra.mxu0 0.0
  %1029 = vmatprep.subr.mxu0 0.0
  %1030 = vmatpush2.msra.mxu0 0.0
  %1031 = vmatprep.subr.mxu0 0.0
  %1032 = vmatpush2.msra.mxu0 0.0
  %1033 = vmatprep.subr.mxu0 0.0
  %1034 = vmatpush2.msra.mxu0 0.0
  %1035 = vmatprep.subr.mxu0 0.0
  %1036 = vmatpush2.msra.mxu0 0.0
  %1037 = vmatprep.subr.mxu0 0.0
  %1038 = vmatpush2.msra.mxu0 0.0
  %1039 = vmatprep.subr.mxu0 0.0
  %1040 = vmatpush2.msra.mxu0 0.0
  %1041 = vmatprep.subr.mxu0 0.0
  %1042 = vmatpush2.msra.mxu0 0.0
  %1043 = vmatprep.subr.mxu0 0.0
  %1044 = vmatpush2.msra.mxu0 0.0
  %1045 = vmatprep.subr.mxu0 0.0
  %1046 = vmatpush2.msra.mxu0 0.0
  %1047 = vmatprep.mubr.f32.mxu0 0.0
  %1048 = vmatmul.mubr.f32.gmra.mxu0 %v981
  %v1049 = vpop.f32.mrf.mxu0
  %v1050 = vadd.f32 0.0, %v1049
  %v1051 = vpop.f32.mrf.mxu0
  %v1052 = vadd.f32 0.0, %v1051
  %1053 = vdwg.mxu0
  %v1054 = vadd.f32 %v1050, %v179
  %v1055 = vxor.u32 %v1054, 2147483648
  %v1056 = vmul.f32 %v1055, 1.442695
  %v1057 = vpow.pop %v1056
  %v1058 = vadd.f32 %v1057, 1.0
  %v1059 = vrcp.pop %v1058
  %v1060 = vmul.f32 1.0, %v1059
  %v1061 = vtanh.pop %v1054
  %v1062 = vmul.f32 %v1060, %v939
  %1064 = vrot.lane.b32.xlu0 %v1061, 64
  %v1065 = vpop.permute.xlu0 %1064
  %v1067 = vmul.f32 %v1060, %v1065
  %1069 = vrot.lane.b32.xlu0 %v1067, 32
  %v1070 = vpop.permute.xlu0 %1069
  %v1072 = vadd.f32 %v1062, %v1070
  %v1073 = vtanh.pop %v1072
  %1075 = vrot.lane.b32.xlu0 %v1073, 64
  %v1076 = vpop.permute.xlu0 %1075
  %v1078 = vmul.f32 %v1060, %v1076
  %v1079 = vadd.f32 %v1052, %v412
  %v1080 = vxor.u32 %v1079, 2147483648
  %v1081 = vmul.f32 %v1080, 1.442695
  %v1082 = vpow.pop %v1081
  %v1083 = vadd.f32 %v1082, 1.0
  %v1084 = vrcp.pop %v1083
  %v1085 = vmul.f32 1.0, %v1084
  %v1086 = vtanh.pop %v1079
  %v1087 = vmul.f32 %v1085, %v964
  %1089 = vrot.lane.b32.xlu0 %v1086, 64
  %v1090 = vpop.permute.xlu0 %1089
  %v1092 = vmul.f32 %v1085, %v1090
  %1094 = vrot.lane.b32.xlu0 %v1092, 32
  %v1095 = vpop.permute.xlu0 %1094
  %v1097 = vadd.f32 %v1087, %v1095
  %v1098 = vtanh.pop %v1097
  %1100 = vrot.lane.b32.xlu0 %v1098, 64
  %v1101 = vpop.permute.xlu0 %1100
  %v1103 = vmul.f32 %v1085, %v1101
  %1105 = vrot.lane.b32.xlu0 %v1078, 32
  %v1106 = vpop.permute.xlu0 %1105
  %1109 = vrot.lane.b32.xlu0 %v1103, 64
  %v1110 = vpop.permute.xlu0 %1109
  %v1112 = vsel %vm307, %v1106, %v1110
  %v1114 = vsel %vm204, %v1112, 0
  %1116 = vmatprep.subr.mxu0 0.0
  %1117 = vmatpush1.msra.mxu0 0.0
  %1118 = vmatprep.subr.mxu0 0.0
  %1119 = vmatpush1.msra.mxu0 0.0
  %1120 = vmatprep.subr.mxu0 0.0
  %1121 = vmatpush1.msra.mxu0 0.0
  %1122 = vmatprep.subr.mxu0 0.0
  %1123 = vmatpush1.msra.mxu0 0.0
  %1124 = vmatprep.subr.mxu0 0.0
  %1125 = vmatpush1.msra.mxu0 0.0
  %1126 = vmatprep.subr.mxu0 0.0
  %1127 = vmatpush1.msra.mxu0 0.0
  %1128 = vmatprep.subr.mxu0 0.0
  %1129 = vmatpush1.msra.mxu0 0.0
  %1130 = vmatprep.subr.mxu0 0.0
  %1131 = vmatpush1.msra.mxu0 0.0
  %1132 = vmatprep.subr.mxu0 %v202
  %1133 = vmatpush1.msra.mxu0 %v201
  %1134 = vmatprep.subr.mxu0 %v200
  %1135 = vmatpush1.msra.mxu0 %v199
  %1136 = vmatprep.subr.mxu0 %v198
  %1137 = vmatpush1.msra.mxu0 %v197
  %1138 = vmatprep.subr.mxu0 %v196
  %1139 = vmatpush1.msra.mxu0 %v195
  %1140 = vmatprep.subr.mxu0 %v194
  %1141 = vmatpush1.msra.mxu0 %v193
  %1142 = vmatprep.subr.mxu0 %v192
  %1143 = vmatpush1.msra.mxu0 %v191
  %1144 = vmatprep.subr.mxu0 %v190
  %1145 = vmatpush1.msra.mxu0 %v189
  %1146 = vmatprep.subr.mxu0 %v188
  %1147 = vmatpush1.msra.mxu0 %v187
  %1148 = vmatprep.subr.mxu0 0.0
  %1149 = vmatpush2.msra.mxu0 0.0
  %1150 = vmatprep.subr.mxu0 0.0
  %1151 = vmatpush2.msra.mxu0 0.0
  %1152 = vmatprep.subr.mxu0 0.0
  %1153 = vmatpush2.msra.mxu0 0.0
  %1154 = vmatprep.subr.mxu0 0.0
  %1155 = vmatpush2.msra.mxu0 0.0
  %1156 = vmatprep.subr.mxu0 0.0
  %1157 = vmatpush2.msra.mxu0 0.0
  %1158 = vmatprep.subr.mxu0 0.0
  %1159 = vmatpush2.msra.mxu0 0.0
  %1160 = vmatprep.subr.mxu0 0.0
  %1161 = vmatpush2.msra.mxu0 0.0
  %1162 = vmatprep.subr.mxu0 0.0
  %1163 = vmatpush2.msra.mxu0 0.0
  %1164 = vmatprep.subr.mxu0 0.0
  %1165 = vmatpush2.msra.mxu0 0.0
  %1166 = vmatprep.subr.mxu0 0.0
  %1167 = vmatpush2.msra.mxu0 0.0
  %1168 = vmatprep.subr.mxu0 0.0
  %1169 = vmatpush2.msra.mxu0 0.0
  %1170 = vmatprep.subr.mxu0 0.0
  %1171 = vmatpush2.msra.mxu0 0.0
  %1172 = vmatprep.subr.mxu0 0.0
  %1173 = vmatpush2.msra.mxu0 0.0
  %1174 = vmatprep.subr.mxu0 0.0
  %1175 = vmatpush2.msra.mxu0 0.0
  %1176 = vmatprep.subr.mxu0 0.0
  %1177 = vmatpush2.msra.mxu0 0.0
  %1178 = vmatprep.subr.mxu0 0.0
  %1179 = vmatpush2.msra.mxu0 0.0
  %1180 = vmatprep.mubr.f32.mxu0 0.0
  %1181 = vmatmul.mubr.f32.gmra.mxu0 %v1114
  %v1182 = vpop.f32.mrf.mxu0
  %v1183 = vadd.f32 0.0, %v1182
  %v1184 = vpop.f32.mrf.mxu0
  %v1185 = vadd.f32 0.0, %v1184
  %1186 = vdwg.mxu0
  %v1187 = vadd.f32 %v1183, %v184
  %v1188 = vxor.u32 %v1187, 2147483648
  %v1189 = vmul.f32 %v1188, 1.442695
  %v1190 = vpow.pop %v1189
  %v1191 = vadd.f32 %v1190, 1.0
  %v1192 = vrcp.pop %v1191
  %v1193 = vmul.f32 1.0, %v1192
  %v1194 = vtanh.pop %v1187
  %v1195 = vmul.f32 %v1193, %v1072
  %1197 = vrot.lane.b32.xlu0 %v1194, 64
  %v1198 = vpop.permute.xlu0 %1197
  %v1200 = vmul.f32 %v1193, %v1198
  %1202 = vrot.lane.b32.xlu0 %v1200, 32
  %v1203 = vpop.permute.xlu0 %1202
  %v1205 = vadd.f32 %v1195, %v1203
  %v1206 = vtanh.pop %v1205
  %1208 = vrot.lane.b32.xlu0 %v1206, 64
  %v1209 = vpop.permute.xlu0 %1208
  %v1211 = vmul.f32 %v1193, %v1209
  %v1212 = vadd.f32 %v1185, %v412
  %v1213 = vxor.u32 %v1212, 2147483648
  %v1214 = vmul.f32 %v1213, 1.442695
  %v1215 = vpow.pop %v1214
  %v1216 = vadd.f32 %v1215, 1.0
  %v1217 = vrcp.pop %v1216
  %v1218 = vmul.f32 1.0, %v1217
  %v1219 = vtanh.pop %v1212
  %v1220 = vmul.f32 %v1218, %v1097
  %1222 = vrot.lane.b32.xlu0 %v1219, 64
  %v1223 = vpop.permute.xlu0 %1222
  %v1225 = vmul.f32 %v1218, %v1223
  %1227 = vrot.lane.b32.xlu0 %v1225, 32
  %v1228 = vpop.permute.xlu0 %1227
  %v1230 = vadd.f32 %v1220, %v1228
  %v1231 = vtanh.pop %v1230
  %1233 = vrot.lane.b32.xlu0 %v1231, 64
  %v1234 = vpop.permute.xlu0 %1233
  %v1236 = vmul.f32 %v1218, %v1234
  %1238 = vrot.lane.b32.xlu0 %v1211, 32
  %v1239 = vpop.permute.xlu0 %1238
  %1242 = vrot.lane.b32.xlu0 %v1236, 64
  %v1243 = vpop.permute.xlu0 %1242
  %v1245 = vsel %vm307, %v1239, %v1243
  %v1247 = vsel %vm204, %v1245, 0
  %1249 = vmatprep.subr.mxu0 0.0
  %1250 = vmatpush1.msra.mxu0 0.0
  %1251 = vmatprep.subr.mxu0 0.0
  %1252 = vmatpush1.msra.mxu0 0.0
  %1253 = vmatprep.subr.mxu0 0.0
  %1254 = vmatpush1.msra.mxu0 0.0
  %1255 = vmatprep.subr.mxu0 0.0
  %1256 = vmatpush1.msra.mxu0 0.0
  %1257 = vmatprep.subr.mxu0 0.0
  %1258 = vmatpush1.msra.mxu0 0.0
  %1259 = vmatprep.subr.mxu0 0.0
  %1260 = vmatpush1.msra.mxu0 0.0
  %1261 = vmatprep.subr.mxu0 0.0
  %1262 = vmatpush1.msra.mxu0 0.0
  %1263 = vmatprep.subr.mxu0 0.0
  %1264 = vmatpush1.msra.mxu0 0.0
  %1265 = vmatprep.subr.mxu0 %v202
  %1266 = vmatpush1.msra.mxu0 %v201
  %1267 = vmatprep.subr.mxu0 %v200
  %1268 = vmatpush1.msra.mxu0 %v199
  %1269 = vmatprep.subr.mxu0 %v198
  %1270 = vmatpush1.msra.mxu0 %v197
  %1271 = vmatprep.subr.mxu0 %v196
  %1272 = vmatpush1.msra.mxu0 %v195
  %1273 = vmatprep.subr.mxu0 %v194
  %1274 = vmatpush1.msra.mxu0 %v193
  %1275 = vmatprep.subr.mxu0 %v192
  %1276 = vmatpush1.msra.mxu0 %v191
  %1277 = vmatprep.subr.mxu0 %v190
  %1278 = vmatpush1.msra.mxu0 %v189
  %1279 = vmatprep.subr.mxu0 %v188
  %1280 = vmatpush1.msra.mxu0 %v187
  %1281 = vmatprep.subr.mxu0 0.0
  %1282 = vmatpush2.msra.mxu0 0.0
  %1283 = vmatprep.subr.mxu0 0.0
  %1284 = vmatpush2.msra.mxu0 0.0
  %1285 = vmatprep.subr.mxu0 0.0
  %1286 = vmatpush2.msra.mxu0 0.0
  %1287 = vmatprep.subr.mxu0 0.0
  %1288 = vmatpush2.msra.mxu0 0.0
  %1289 = vmatprep.subr.mxu0 0.0
  %1290 = vmatpush2.msra.mxu0 0.0
  %1291 = vmatprep.subr.mxu0 0.0
  %1292 = vmatpush2.msra.mxu0 0.0
  %1293 = vmatprep.subr.mxu0 0.0
  %1294 = vmatpush2.msra.mxu0 0.0
  %1295 = vmatprep.subr.mxu0 0.0
  %1296 = vmatpush2.msra.mxu0 0.0
  %1297 = vmatprep.subr.mxu0 0.0
  %1298 = vmatpush2.msra.mxu0 0.0
  %1299 = vmatprep.subr.mxu0 0.0
  %1300 = vmatpush2.msra.mxu0 0.0
  %1301 = vmatprep.subr.mxu0 0.0
  %1302 = vmatpush2.msra.mxu0 0.0
  %1303 = vmatprep.subr.mxu0 0.0
  %1304 = vmatpush2.msra.mxu0 0.0
  %1305 = vmatprep.subr.mxu0 0.0
  %1306 = vmatpush2.msra.mxu0 0.0
  %1307 = vmatprep.subr.mxu0 0.0
  %1308 = vmatpush2.msra.mxu0 0.0
  %1309 = vmatprep.subr.mxu0 0.0
  %1310 = vmatpush2.msra.mxu0 0.0
  %1311 = vmatprep.subr.mxu0 0.0
  %1312 = vmatpush2.msra.mxu0 0.0
  %1313 = vmatprep.mubr.f32.mxu0 0.0
  %1314 = vmatmul.mubr.f32.gmra.mxu0 %v1247
  %v1315 = vpop.f32.mrf.mxu0
  %v1316 = vpop.f32.mrf.mxu0
  %v1317 = vadd.f32 0.0, %v1316
  %1318 = vdwg.mxu0
  %v1319 = vadd.f32 %v1317, %v412
  %v1320 = vxor.u32 %v1319, 2147483648
  %v1321 = vmul.f32 %v1320, 1.442695
  %v1322 = vpow.pop %v1321
  %v1323 = vadd.f32 %v1322, 1.0
  %v1324 = vrcp.pop %v1323
  %v1325 = vmul.f32 1.0, %v1324
  %v1326 = vtanh.pop %v1319
  %v1327 = vmul.f32 %v1325, %v1230
  %1329 = vrot.lane.b32.xlu0 %v1326, 64
  %v1330 = vpop.permute.xlu0 %1329
  %v1332 = vmul.f32 %v1325, %v1330
  %1334 = vrot.lane.b32.xlu0 %v1332, 32
  %v1335 = vpop.permute.xlu0 %1334
  %v1337 = vadd.f32 %v1327, %v1335
  %v1338 = vtanh.pop %v1337
  %1340 = vrot.lane.b32.xlu0 %v1338, 64
  %v1341 = vpop.permute.xlu0 %1340
  %v1343 = vmul.f32 %v1325, %v1341
  %v1344 = vld [vmem:[%s5] sm:$0xff]
  %v1345 = vld [vmem:[%s5 + $0x8] sm:$0xff]
  %v1346 = vld [vmem:[%s5 + $0x10] sm:$0xff]
  %v1347 = vld [vmem:[%s5 + $0x18] sm:$0xff]
  %v1348 = vld [vmem:[%s6] sm:$0x1]
  %v1350 = vlaneseq
  %v1351 = vshrl.u32 %v1350, 7
  %v1352 = vsub.s32 0, %v1351
  %v1353 = vrot.slane %v1348, %v1352
  %1356 = vrot.lane.b32.xlu0 %v1343, 32
  %v1357 = vpop.permute.xlu0 %1356
  %v1358 = vsel %vm307, %v1357, 0
  %1360 = vmatprep.subr.mxu0 0.0
  %1361 = vmatpush1.msra.mxu0 0.0
  %1362 = vmatprep.subr.mxu0 0.0
  %1363 = vmatpush1.msra.mxu0 0.0
  %1364 = vmatprep.subr.mxu0 0.0
  %1365 = vmatpush1.msra.mxu0 0.0
  %1366 = vmatprep.subr.mxu0 0.0
  %1367 = vmatpush1.msra.mxu0 0.0
  %1368 = vmatprep.subr.mxu0 0.0
  %1369 = vmatpush1.msra.mxu0 0.0
  %1370 = vmatprep.subr.mxu0 0.0
  %1371 = vmatpush1.msra.mxu0 0.0
  %1372 = vmatprep.subr.mxu0 0.0
  %1373 = vmatpush1.msra.mxu0 0.0
  %1374 = vmatprep.subr.mxu0 0.0
  %1375 = vmatpush1.msra.mxu0 0.0
  %1376 = vmatprep.subr.mxu0 0.0
  %1377 = vmatpush1.msra.mxu0 0.0
  %1378 = vmatprep.subr.mxu0 0.0
  %1379 = vmatpush1.msra.mxu0 0.0
  %1380 = vmatprep.subr.mxu0 0.0
  %1381 = vmatpush1.msra.mxu0 0.0
  %1382 = vmatprep.subr.mxu0 0.0
  %1383 = vmatpush1.msra.mxu0 0.0
  %1384 = vmatprep.subr.mxu0 0.0
  %1385 = vmatpush1.msra.mxu0 %v1347
  %1386 = vmatprep.subr.mxu0 0.0
  %1387 = vmatpush1.msra.mxu0 %v1346
  %1388 = vmatprep.subr.mxu0 0.0
  %1389 = vmatpush1.msra.mxu0 %v1345
  %1390 = vmatprep.subr.mxu0 0.0
  %1391 = vmatpush1.msra.mxu0 %v1344
  %1392 = vmatprep.subr.mxu0 0.0
  %1393 = vmatpush2.msra.mxu0 0.0
  %1394 = vmatprep.subr.mxu0 0.0
  %1395 = vmatpush2.msra.mxu0 0.0
  %1396 = vmatprep.subr.mxu0 0.0
  %1397 = vmatpush2.msra.mxu0 0.0
  %1398 = vmatprep.subr.mxu0 0.0
  %1399 = vmatpush2.msra.mxu0 0.0
  %1400 = vmatprep.subr.mxu0 0.0
  %1401 = vmatpush2.msra.mxu0 0.0
  %1402 = vmatprep.subr.mxu0 0.0
  %1403 = vmatpush2.msra.mxu0 0.0
  %1404 = vmatprep.subr.mxu0 0.0
  %1405 = vmatpush2.msra.mxu0 0.0
  %1406 = vmatprep.subr.mxu0 0.0
  %1407 = vmatpush2.msra.mxu0 0.0
  %1408 = vmatprep.subr.mxu0 0.0
  %1409 = vmatpush2.msra.mxu0 0.0
  %1410 = vmatprep.subr.mxu0 0.0
  %1411 = vmatpush2.msra.mxu0 0.0
  %1412 = vmatprep.subr.mxu0 0.0
  %1413 = vmatpush2.msra.mxu0 0.0
  %1414 = vmatprep.subr.mxu0 0.0
  %1415 = vmatpush2.msra.mxu0 0.0
  %1416 = vmatprep.subr.mxu0 0.0
  %1417 = vmatpush2.msra.mxu0 0.0
  %1418 = vmatprep.subr.mxu0 0.0
  %1419 = vmatpush2.msra.mxu0 0.0
  %1420 = vmatprep.subr.mxu0 0.0
  %1421 = vmatpush2.msra.mxu0 0.0
  %1422 = vmatprep.subr.mxu0 0.0
  %1423 = vmatpush2.msra.mxu0 0.0
  %1424 = vmatprep.mubr.f32.mxu0 0.0
  %1425 = vmatmul.mubr.f32.gmra.mxu0 %v1358
  %v1426 = vpop.f32.mrf.mxu0
  %v1427 = vadd.f32 %v1353, %v1426
  %v1428 = vpop.f32.mrf.mxu0
  %1429 = vdwg.mxu0
  %v1430 = vmax.f32 %v1427, 0.0
  %v1431 = vld [vmem:[%s7] sm:$0xff]
  %v1432 = vld [vmem:[%s7 + $0x8] sm:$0xff]
  %v1433 = vld [vmem:[%s7 + $0x10] sm:$0xff]
  %v1434 = vld [vmem:[%s7 + $0x18] sm:$0xff]
  %v1435 = vld [vmem:[%s8] sm:$0x1]
  %v1437 = vlaneseq
  %v1438 = vshrl.u32 %v1437, 7
  %v1439 = vsub.s32 0, %v1438
  %v1440 = vrot.slane %v1435, %v1439
  %v1443 = vsel %vm307, %v1430, 0
  %1445 = vmatprep.subr.mxu0 0.0
  %1446 = vmatpush1.msra.mxu0 0.0
  %1447 = vmatprep.subr.mxu0 0.0
  %1448 = vmatpush1.msra.mxu0 0.0
  %1449 = vmatprep.subr.mxu0 0.0
  %1450 = vmatpush1.msra.mxu0 0.0
  %1451 = vmatprep.subr.mxu0 0.0
  %1452 = vmatpush1.msra.mxu0 0.0
  %1453 = vmatprep.subr.mxu0 0.0
  %1454 = vmatpush1.msra.mxu0 0.0
  %1455 = vmatprep.subr.mxu0 0.0
  %1456 = vmatpush1.msra.mxu0 0.0
  %1457 = vmatprep.subr.mxu0 0.0
  %1458 = vmatpush1.msra.mxu0 0.0
  %1459 = vmatprep.subr.mxu0 0.0
  %1460 = vmatpush1.msra.mxu0 0.0
  %1461 = vmatprep.subr.mxu0 0.0
  %1462 = vmatpush1.msra.mxu0 0.0
  %1463 = vmatprep.subr.mxu0 0.0
  %1464 = vmatpush1.msra.mxu0 0.0
  %1465 = vmatprep.subr.mxu0 0.0
  %1466 = vmatpush1.msra.mxu0 0.0
  %1467 = vmatprep.subr.mxu0 0.0
  %1468 = vmatpush1.msra.mxu0 0.0
  %1469 = vmatprep.subr.mxu0 0.0
  %1470 = vmatpush1.msra.mxu0 %v1434
  %1471 = vmatprep.subr.mxu0 0.0
  %1472 = vmatpush1.msra.mxu0 %v1433
  %1473 = vmatprep.subr.mxu0 0.0
  %1474 = vmatpush1.msra.mxu0 %v1432
  %1475 = vmatprep.subr.mxu0 0.0
  %1476 = vmatpush1.msra.mxu0 %v1431
  %1477 = vmatprep.subr.mxu0 0.0
  %1478 = vmatpush2.msra.mxu0 0.0
  %1479 = vmatprep.subr.mxu0 0.0
  %1480 = vmatpush2.msra.mxu0 0.0
  %1481 = vmatprep.subr.mxu0 0.0
  %1482 = vmatpush2.msra.mxu0 0.0
  %1483 = vmatprep.subr.mxu0 0.0
  %1484 = vmatpush2.msra.mxu0 0.0
  %1485 = vmatprep.subr.mxu0 0.0
  %1486 = vmatpush2.msra.mxu0 0.0
  %1487 = vmatprep.subr.mxu0 0.0
  %1488 = vmatpush2.msra.mxu0 0.0
  %1489 = vmatprep.subr.mxu0 0.0
  %1490 = vmatpush2.msra.mxu0 0.0
  %1491 = vmatprep.subr.mxu0 0.0
  %1492 = vmatpush2.msra.mxu0 0.0
  %1493 = vmatprep.subr.mxu0 0.0
  %1494 = vmatpush2.msra.mxu0 0.0
  %1495 = vmatprep.subr.mxu0 0.0
  %1496 = vmatpush2.msra.mxu0 0.0
  %1497 = vmatprep.subr.mxu0 0.0
  %1498 = vmatpush2.msra.mxu0 0.0
  %1499 = vmatprep.subr.mxu0 0.0
  %1500 = vmatpush2.msra.mxu0 0.0
  %1501 = vmatprep.subr.mxu0 0.0
  %1502 = vmatpush2.msra.mxu0 0.0
  %1503 = vmatprep.subr.mxu0 0.0
  %1504 = vmatpush2.msra.mxu0 0.0
  %1505 = vmatprep.subr.mxu0 0.0
  %1506 = vmatpush2.msra.mxu0 0.0
  %1507 = vmatprep.subr.mxu0 0.0
  %1508 = vmatpush2.msra.mxu0 0.0
  %1509 = vmatprep.mubr.f32.mxu0 0.0
  %1510 = vmatmul.mubr.f32.gmra.mxu0 %v1443
  %v1511 = vpop.f32.mrf.mxu0
  %v1512 = vadd.f32 %v1440, %v1511
  %v1513 = vpop.f32.mrf.mxu0
  %1514 = vdwg.mxu0
  %v1515 = vmax.f32 %v1512, 0.0
  %v1516 = vld [vmem:[%s9] sm:$0x1]
  %v1518 = vlaneseq
  %v1519 = vshrl.u32 %v1518, 7
  %v1520 = vsub.s32 0, %v1519
  %v1521 = vrot.slane %v1516, %v1520
  %v1523 = vmul.f32 %v1515, %v1521
  %v1524 = vsel %vm57, %v1523, 0.0
  %1525 = vadd.xlane.f32.xlu0 %v1524
  %v1526 = vpop.xlane.xlu0 %1525
  %v1527 = vld [vmem:[#allocation2] sm:$0x1]
  %v1529 = vlaneseq
  %v1530 = vshrl.u32 %v1529, 7
  %v1531 = vsub.s32 0, %v1530
  %v1532 = vrot.slane %v1527, %v1531
  %v1534 = vadd.f32 %v1526, %v1532
  %1537 = vrot.lane.b32.xlu0 %v1534, 32
  %v1538 = vpop.permute.xlu0 %1537
  %v1540 = vsel %vm307, %v1357, %v1538
  %vm1541 = vcmask 269312
  %v1542 = vsel %vm1541, %v1540, 0.0
  %1543 = vst [vmem:[%s11] sm:$0xff] %v1542
  // Predicated region
  $region46: #{_forward_impl.1} parent=0 // pred_check
    _
  $region47: #{_forward_impl.1} parent=0 // pred_check_branch
    %1545 = sbr.rel (0) target = $region49
  $region48: #{_forward_impl.1} parent=0 // pred_region
    _
  $region49: #{_forward_impl.1} parent=0 // pred_fallthru
    _
  // Predicated region
  $region50: #{_forward_impl.1} parent=0 // pred_check
    _
  $region51: #{_forward_impl.1} parent=0 // pred_check_branch
    %1547 = sbr.rel (0) target = $region53
  $region52: #{_forward_impl.1} parent=0 // pred_region
    _
  $region53: #{_forward_impl.1} parent=0 // pred_fallthru
    _

</llo_original>
